<compile_context>
chip_gen: v5e
topology: v5e:2x2
jax: 0.10.0
libtpu: 0.0.40
codegen_flags: <defaults>
</compile_context>

<pallas_src>
import functools

import jax
import jax.numpy as jnp
from jax.experimental import pallas as pl
from jax.experimental.pallas import tpu as pltpu


def _round_up(v, m):
    return -(-v // m) * m


def _choose_windows_per_block(nw, ws, target_rows, max_wt=None):
    """Largest divisor wt of nw with a sublane-friendly wt*ws row block
    (multiple of 8, or the full padded length), near `target_rows` rows, and
    (optionally) capped so the grid keeps >= 2 steps."""
    valid = [wt for wt in range(1, nw + 1)
             if nw % wt == 0 and ((wt * ws) % 8 == 0 or wt == nw)]
    if max_wt is not None:
        capped = [wt for wt in valid if wt <= max_wt]
        if capped:
            valid = capped
    under = [wt for wt in valid if wt * ws <= target_rows]
    return max(under) if under else min(valid)


def _vmem_bytes_estimate(rows, C, num_heads, ws, wt, x_bytes, out_bytes,
                         c_bytes, has_mask):
    """Rough VMEM budget (lane/sublane padding included): single-buffered
    weights + double-buffered x/out blocks + scratch + live intermediates."""
    Cl = _round_up(C, 128)
    tCl = _round_up(3 * C, 128)
    wsl = _round_up(ws, 128)
    ws8 = _round_up(ws, 8)
    r8 = _round_up(rows, 8)
    C8 = _round_up(C, 8)
    weights = C8 * tCl * c_bytes + C8 * Cl * c_bytes + 8 * (tCl + Cl) * 4
    io = 2 * r8 * Cl * (x_bytes + out_bytes)                       # double-buffered
    rel = num_heads * ws8 * wsl * 4
    mask = 2 * wt * ws8 * wsl * 4 if has_mask else 0
    acc = r8 * Cl * 4
    live = r8 * tCl * (4 + c_bytes) + r8 * Cl * 4                  # qkv f32 + cast + proj
    return weights + io + rel + mask + acc + live


def _swin_attn_kernel(x_ref, wqkv_ref, bqkv_ref, wproj_ref, bproj_ref, rel_ref,
                      *rest, num_heads, head_dim, wt, ws, compute_dtype,
                      approx_recip, has_mask):
    """Attention over a block of `wt` windows.

    x_ref    : [1, wt*ws, C]   token rows of wt consecutive windows (orig dtype)
    wqkv_ref : [C, 3C]         pre-transposed, Q columns pre-scaled
    bqkv_ref : [1, 3C] f32     Q entries pre-scaled
    wproj_ref: [C, C]
    bproj_ref: [1, C]  f32
    rel_ref  : [nh, ws, ws]    relative-position bias (resident)
    mask_ref : [wt, ws, ws]    shift mask (only present when shift > 0)
    o_ref    : [1, wt*ws, C]
    acc_ref  : [wt*ws, C] f32  VMEM scratch for per-head attention outputs
    """
    if has_mask:
        mask_ref, o_ref, acc_ref = rest
    else:
        o_ref, acc_ref = rest

    C = num_heads * head_dim

    # cast inside the kernel (no wrapper-side HBM cast pass)
    x = x_ref[0].astype(compute_dtype)                              # [rows, C]
    qkv = jnp.dot(x, wqkv_ref[...], preferred_element_type=jnp.float32)
    # scale already folded into the Q columns; cast the whole tensor once
    qkv = (qkv + bqkv_ref[...]).astype(compute_dtype)               # [rows, 3C]

    if has_mask:
        mask = mask_ref[...]                                        # [wt, ws, ws] f32

    # TODO(synk): group heads into 128-lane column slabs (g = 128 // head_dim
    # batched einsum) to avoid head_dim-wide lane slices / masked acc stores;
    # needs a ws<->head relayout that is not cheaply expressible in-kernel yet.
    for h in range(num_heads):                                      # static unroll
        lo = h * head_dim
        qh = qkv[:, lo:lo + head_dim].reshape(wt, ws, head_dim)
        kh = qkv[:, C + lo:C + lo + head_dim].reshape(wt, ws, head_dim)
        vh = qkv[:, 2 * C + lo:2 * C + lo + head_dim].reshape(wt, ws, head_dim)

        # window-batched score matmul: [wt, ws, ws]
        attn = jnp.einsum('bqd,bkd->bqk', qh, kh,
                          preferred_element_type=jnp.float32)
        attn = attn + rel_ref[h:h + 1]
        if has_mask:
            attn = attn + mask

        # stable softmax (f32); reciprocal on the EUP instead of a VPU divide
        attn = attn - jnp.max(attn, axis=-1, keepdims=True)
        p = jnp.exp(attn)
        denom = jnp.sum(p, axis=-1, keepdims=True)
        p = p * pl.reciprocal(denom, approx=approx_recip)

        oh = jnp.einsum('bqk,bkd->bqd', p.astype(compute_dtype), vh,
                        preferred_element_type=jnp.float32)         # [wt, ws, hd]
        acc_ref[:, lo:lo + head_dim] = oh.reshape(wt * ws, head_dim)

    out = jnp.dot(acc_ref[...].astype(compute_dtype), wproj_ref[...],
                  preferred_element_type=jnp.float32)
    out = out + bproj_ref[...]                                      # [rows, C]
    o_ref[0] = out.astype(o_ref.dtype)


def prepare_params(qkv_weight, qkv_bias, proj_weight, proj_bias, rel_pos_bias,
                   num_heads, compute_dtype=jnp.bfloat16):
    """One-time parameter prep: transpose torch-layout weights, fold the
    1/sqrt(head_dim) scale into the Q columns, cast matmul operands."""
    qkv_weight = jnp.asarray(qkv_weight, jnp.float32)
    qkv_bias = jnp.asarray(qkv_bias, jnp.float32)
    C = qkv_weight.shape[1]
    head_dim = C // num_heads
    scale = float(head_dim) ** -0.5

    col_scale = jnp.concatenate([jnp.full((C,), scale, jnp.float32),
                                 jnp.ones((2 * C,), jnp.float32)])
    wqkv = qkv_weight.T * col_scale[None, :]                        # [C, 3C]
    bqkv = qkv_bias * col_scale                                     # [3C]

    # TODO(synk): zero-pad C to a multiple of 128 (lane-dense blocks) for dims
    # like 96/192; skipped here to keep wrapper HBM traffic / semantics simple.
    return dict(
        wqkv=wqkv.astype(compute_dtype),                            # [C, 3C]
        bqkv=bqkv[None, :].astype(jnp.float32),                     # [1, 3C]
        wproj=jnp.asarray(proj_weight, jnp.float32).T.astype(compute_dtype),
        bproj=jnp.asarray(proj_bias, jnp.float32)[None, :].astype(jnp.float32),
        rel=jnp.asarray(rel_pos_bias).astype(jnp.float32),          # [nh, ws, ws]
    )


def shifted_window_attention_pallas(x, params, window_size, num_heads,
                                    shift_size, compute_dtype=jnp.bfloat16):
    """x: [B, H, C].  params: output of prepare_params."""
    B, H, C = x.shape
    ws = window_size[0]
    head_dim = C // num_heads

    pad_b = (ws - H % ws) % ws
    pad_H = H + pad_b

    shift = shift_size[0]
    if ws >= pad_H:
        shift = 0
    has_mask = shift > 0

    # Wrapper-side HBM passes only when actually needed (cast is in-kernel).
    # TODO(synk): fold cyclic shift / padding into manual DMA index math to
    # drop the remaining pre/post HBM passes when shift > 0 or pad_b > 0.
    xp = x
    if pad_b > 0:
        xp = jnp.pad(xp, ((0, 0), (0, pad_b), (0, 0)))
    if has_mask:
        xp = jnp.roll(xp, -shift, axis=1)

    nw = pad_H // ws

    # per-window shift mask (batch independent), same construction as torch
    if has_mask:
        mask1d = jnp.zeros((pad_H,), jnp.float32)
        mask1d = mask1d.at[pad_H - ws:pad_H - shift].set(1.0)
        mask1d = mask1d.at[pad_H - shift:].set(2.0)
        maskw = mask1d.reshape(nw, ws)
        attn_mask = maskw[:, None, :] - maskw[:, :, None]           # [nw, ws, ws]
        attn_mask = jnp.where(attn_mask != 0, -100.0, 0.0)

    # device VMEM capacity (v7x: 64 MiB per TC); conservative fallback.
    try:
        phys_vmem = int(pltpu.get_tpu_info().vmem_capacity_bytes)
    except Exception:
        phys_vmem = 64 * 1024 * 1024

    # keep >= 2 grid steps when B == 1 so both v7x TensorCores get work
    max_wt = max(1, nw // 2) if (B == 1 and nw >= 2) else None

    x_bytes = jnp.dtype(x.dtype).itemsize
    c_bytes = jnp.dtype(compute_dtype).itemsize
    target_rows = 256 if C >= 768 else 512                          # generation-aware
    wt = _choose_windows_per_block(nw, ws, target_rows, max_wt)
    rows = wt * ws
    est = _vmem_bytes_estimate(rows, C, num_heads, ws, wt, x_bytes, x_bytes,
                               c_bytes, has_mask)
    while est > int(0.85 * phys_vmem) and target_rows > ws:
        target_rows = max(ws, target_rows // 2)
        wt = _choose_windows_per_block(nw, ws, target_rows, max_wt)
        rows = wt * ws
        est = _vmem_bytes_estimate(rows, C, num_heads, ws, wt, x_bytes, x_bytes,
                                   c_bytes, has_mask)
    vmem_limit = int(min(max(est * 5 // 4, 32 * 1024 * 1024), phys_vmem))

    grid = (B, nw // wt)
    three_c = 3 * C

    kernel = functools.partial(
        _swin_attn_kernel, num_heads=num_heads, head_dim=head_dim,
        wt=wt, ws=ws, compute_dtype=compute_dtype,
        approx_recip=(compute_dtype != jnp.float32), has_mask=has_mask)

    # constant-index (resident) parameter inputs: single-buffered, halving
    # their VMEM footprint vs. default double-buffering.
    def const_spec(shape):
        return pl.BlockSpec(shape, lambda b, j: (0,) * len(shape),
                            pipeline_mode=pl.Buffered(1))

    in_specs = [
        pl.BlockSpec((1, rows, C), lambda b, j: (b, j, 0)),         # x
        const_spec((C, three_c)),                                   # Wqkv (Q pre-scaled)
        const_spec((1, three_c)),                                   # bqkv
        const_spec((C, C)),                                         # Wproj
        const_spec((1, C)),                                         # bproj
        const_spec((num_heads, ws, ws)),                            # rel bias
    ]
    args = [xp, params['wqkv'], params['bqkv'], params['wproj'],
            params['bproj'], params['rel']]
    if has_mask:
        in_specs.append(pl.BlockSpec((wt, ws, ws), lambda b, j: (j, 0, 0)))
        args.append(attn_mask)

    out = pl.pallas_call(
        kernel,
        out_shape=jax.ShapeDtypeStruct((B, pad_H, C), x.dtype),
        grid_spec=pltpu.PrefetchScalarGridSpec(
            num_scalar_prefetch=0,
            grid=grid,
            in_specs=in_specs,
            out_specs=pl.BlockSpec((1, rows, C), lambda b, j: (b, j, 0)),
            scratch_shapes=[pltpu.VMEM((rows, C), jnp.float32)],
        ),
        compiler_params=pltpu.CompilerParams(
            dimension_semantics=("parallel", "parallel"),
            vmem_limit_bytes=vmem_limit),
    )(*args)

    y = out
    if has_mask:
        y = jnp.roll(y, shift, axis=1)
    if pad_b > 0:
        y = y[:, :H, :]
    return y


def _reference(x, qkv_w, qkv_b, proj_w, proj_b, rel_bias, ws, nh, shift):
    """Pure-JAX transcription of the PyTorch forward, used for verification."""
    B, H, C = x.shape
    pad_b = (ws - H % ws) % ws
    xp = jnp.pad(x, ((0, 0), (0, pad_b), (0, 0)))
    pad_H = H + pad_b
    if ws >= pad_H:
        shift = 0
    if shift > 0:
        xp = jnp.roll(xp, -shift, axis=1)
    nw = pad_H // ws
    xw = xp.reshape(B * nw, ws, C)
    qkv = xw @ qkv_w.T + qkv_b
    qkv = qkv.reshape(B * nw, ws, 3, nh, C // nh).transpose(2, 0, 3, 1, 4)
    q, k, v = qkv[0], qkv[1], qkv[2]
    q = q * (C // nh) ** -0.5
    attn = q @ jnp.swapaxes(k, -2, -1) + rel_bias[None]
    if shift > 0:
        mask1d = jnp.zeros((pad_H,), jnp.float32)
        mask1d = mask1d.at[pad_H - ws:pad_H - shift].set(1.0)
        mask1d = mask1d.at[pad_H - shift:].set(2.0)
        m = mask1d.reshape(nw, ws)
        am = jnp.where((m[:, None, :] - m[:, :, None]) != 0, -100.0, 0.0)
        attn = attn.reshape(B, nw, nh, ws, ws) + am[None, :, None]
        attn = attn.reshape(B * nw, nh, ws, ws)
    attn = jax.nn.softmax(attn, axis=-1)
    out = jnp.swapaxes(attn @ v, 1, 2).reshape(B * nw, ws, C)
    out = out @ proj_w.T + proj_b
    y = out.reshape(B, pad_H, C)
    if shift > 0:
        y = jnp.roll(y, shift, axis=1)
    return y[:, :H, :]


if __name__ == "__main__":
    # small shapes consistent with the module: dim=32, 4 heads, window 8, shift 4
    B, H, C = 2, 14, 32                    # H=14 exercises the padding path
    num_heads = 4
    window_size = [8]
    ws = window_size[0]

    key = jax.random.PRNGKey(0)
    k_x, k_qw, k_qb, k_pw, k_pb, k_rb = jax.random.split(key, 6)

    x = jax.random.normal(k_x, (B, H, C), jnp.float32)

    qkv_weight = jax.random.normal(k_qw, (3 * C, C), jnp.float32) * 0.05
    qkv_bias = jax.random.normal(k_qb, (3 * C,), jnp.float32) * 0.05
    proj_weight = jax.random.normal(k_pw, (C, C), jnp.float32) * 0.05
    proj_bias = jax.random.normal(k_pb, (C,), jnp.float32) * 0.05

    # relative_position_bias_table: [2*ws-1, num_heads], trunc_normal(std=0.02)
    rpb_table = jax.random.truncated_normal(
        k_rb, -2.0, 2.0, (2 * ws - 1, num_heads), jnp.float32) * 0.02
    rel_idx = (jnp.arange(ws)[:, None] - jnp.arange(ws)[None, :] + ws - 1)
    rel_bias = rpb_table[rel_idx.reshape(-1)].reshape(ws, ws, num_heads)
    rel_bias = jnp.transpose(rel_bias, (2, 0, 1))                   # [nh, ws, ws]

    # --- shifted path (shift=4): f32 strict check + bf16 throughput check ---
    ref_s = _reference(x, qkv_weight, qkv_bias, proj_weight, proj_bias,
                       rel_bias, ws, num_heads, 4)

    params32 = prepare_params(qkv_weight, qkv_bias, proj_weight, proj_bias,
                              rel_bias, num_heads, compute_dtype=jnp.float32)
    out32 = shifted_window_attention_pallas(
        x, params32, window_size, num_heads, [4], compute_dtype=jnp.float32)
    out32 = jax.block_until_ready(out32)
    assert out32.shape == (B, H, C)
    assert jnp.allclose(out32, ref_s, atol=1e-4, rtol=1e-4), "f32 shifted mismatch"

    params16 = prepare_params(qkv_weight, qkv_bias, proj_weight, proj_bias,
                              rel_bias, num_heads, compute_dtype=jnp.bfloat16)
    out16 = shifted_window_attention_pallas(
        x, params16, window_size, num_heads, [4], compute_dtype=jnp.bfloat16)
    out16 = jax.block_until_ready(out16)
    assert out16.shape == (B, H, C)
    assert jnp.allclose(out16, ref_s, atol=3e-2, rtol=3e-2), "bf16 shifted mismatch"

    # --- un-shifted path (shift=0): exercises the mask-free kernel variant ---
    ref_0 = _reference(x, qkv_weight, qkv_bias, proj_weight, proj_bias,
                       rel_bias, ws, num_heads, 0)
    out0 = shifted_window_attention_pallas(
        x, params32, window_size, num_heads, [0], compute_dtype=jnp.float32)
    out0 = jax.block_until_ready(out0)
    assert jnp.allclose(out0, ref_0, atol=1e-4, rtol=1e-4), "f32 unshifted mismatch"

    print("KERNEL_OK")
</pallas_src>

<mosaic_0001>
module attributes {stable_mosaic.version = 11 : i64} {
  func.func @_swin_attn_kernel(%arg0: i32, %arg1: i32, %arg2: memref<1x16x32xf32, #tpu.memory_space<vmem>>, %arg3: memref<32x96xf32, #tpu.memory_space<vmem>>, %arg4: memref<1x96xf32, #tpu.memory_space<vmem>>, %arg5: memref<32x32xf32, #tpu.memory_space<vmem>>, %arg6: memref<1x32xf32, #tpu.memory_space<vmem>>, %arg7: memref<4x8x8xf32, #tpu.memory_space<vmem>>, %arg8: memref<2x8x8xf32, #tpu.memory_space<vmem>>, %arg9: memref<1x16x32xf32, #tpu.memory_space<vmem>>, %arg10: memref<16x32xf32, #tpu.memory_space<vmem>>) attributes {dimension_semantics = [#tpu.dimension_semantics<parallel>, #tpu.dimension_semantics<parallel>], iteration_bounds = array<i64: 2, 1>, scalar_prefetch = 0 : i64, scratch_operands = 1 : i64, tpu.core_type = #tpu.core_type<tc>, window_params = [{transform_indices = @transform_0, window_bounds = array<i64: 1, 16, 32>}, {pipeline_mode = #tpu.pipeline_mode<synchronous>, transform_indices = @transform_1, window_bounds = array<i64: 32, 96>}, {pipeline_mode = #tpu.pipeline_mode<synchronous>, transform_indices = @transform_2, window_bounds = array<i64: 1, 96>}, {pipeline_mode = #tpu.pipeline_mode<synchronous>, transform_indices = @transform_3, window_bounds = array<i64: 32, 32>}, {pipeline_mode = #tpu.pipeline_mode<synchronous>, transform_indices = @transform_4, window_bounds = array<i64: 1, 32>}, {pipeline_mode = #tpu.pipeline_mode<synchronous>, transform_indices = @transform_5, window_bounds = array<i64: 4, 8, 8>}, {transform_indices = @transform_6, window_bounds = array<i64: 2, 8, 8>}, {transform_indices = @transform_7, window_bounds = array<i64: 1, 16, 32>}]} {
    %c0 = arith.constant 0 : index
    %c0_0 = arith.constant 0 : index
    %c0_1 = arith.constant 0 : index
    %0 = vector.load %arg2[%c0, %c0_0, %c0_1] : memref<1x16x32xf32, #tpu.memory_space<vmem>>, vector<1x16x32xf32>
    %1 = vector.shape_cast %0 : vector<1x16x32xf32> to vector<16x32xf32>
    %c0_2 = arith.constant 0 : index
    %c0_3 = arith.constant 0 : index
    %2 = vector.load %arg3[%c0_2, %c0_3] : memref<32x96xf32, #tpu.memory_space<vmem>>, vector<32x96xf32>
    %cst = arith.constant dense<0.000000e+00> : vector<16x96xf32>
    %3 = tpu.matmul %1, %2, %cst {dimension_numbers = #tpu.dot_dimension_numbers<[1], [0], [0], [1], [0, 0, 1, 1], [], []>} : vector<16x32xf32>, vector<32x96xf32>, vector<16x96xf32> -> vector<16x96xf32>
    %c0_4 = arith.constant 0 : index
    %c0_5 = arith.constant 0 : index
    %4 = vector.load %arg4[%c0_4, %c0_5] : memref<1x96xf32, #tpu.memory_space<vmem>>, vector<1x96xf32>
    %5 = vector.broadcast %4 : vector<1x96xf32> to vector<16x96xf32>
    %6 = arith.addf %3, %5 : vector<16x96xf32>
    %c0_6 = arith.constant 0 : index
    %c0_7 = arith.constant 0 : index
    %c0_8 = arith.constant 0 : index
    %7 = vector.load %arg8[%c0_6, %c0_7, %c0_8] : memref<2x8x8xf32, #tpu.memory_space<vmem>>, vector<2x8x8xf32>
    %8 = vector.extract_strided_slice %6 {offsets = [0, 0], sizes = [16, 8], strides = [1, 1]} : vector<16x96xf32> to vector<16x8xf32>
    %9 = vector.shape_cast %8 : vector<16x8xf32> to vector<2x8x8xf32>
    %10 = vector.extract_strided_slice %6 {offsets = [0, 32], sizes = [16, 8], strides = [1, 1]} : vector<16x96xf32> to vector<16x8xf32>
    %11 = vector.shape_cast %10 : vector<16x8xf32> to vector<2x8x8xf32>
    %12 = vector.extract_strided_slice %6 {offsets = [0, 64], sizes = [16, 8], strides = [1, 1]} : vector<16x96xf32> to vector<16x8xf32>
    %13 = vector.shape_cast %12 : vector<16x8xf32> to vector<2x8x8xf32>
    "tpu.trace_start"() <{level = 10 : i32, message = "bqd,bkd->bqk"}> : () -> ()
    %cst_9 = arith.constant dense<0.000000e+00> : vector<2x8x8xf32>
    %14 = tpu.matmul %9, %11, %cst_9 {dimension_numbers = #tpu.dot_dimension_numbers<[2], [2], [1], [1], [0, 0, 0, 1, 1, 1], [0], [0]>} : vector<2x8x8xf32>, vector<2x8x8xf32>, vector<2x8x8xf32> -> vector<2x8x8xf32>
    "tpu.trace_stop"() : () -> ()
    %c0_10 = arith.constant 0 : index
    %c0_11 = arith.constant 0 : index
    %c0_12 = arith.constant 0 : index
    %15 = vector.load %arg7[%c0_10, %c0_11, %c0_12] : memref<4x8x8xf32, #tpu.memory_space<vmem>>, vector<1x8x8xf32>
    %16 = vector.broadcast %15 : vector<1x8x8xf32> to vector<2x8x8xf32>
    %17 = arith.addf %14, %16 : vector<2x8x8xf32>
    %18 = arith.addf %17, %7 : vector<2x8x8xf32>
    %cst_13 = arith.constant dense<0xFF800000> : vector<2x8xf32>
    %19 = vector.multi_reduction <maximumf>, %18, %cst_13 [2] : vector<2x8x8xf32> to vector<2x8xf32>
    %20 = vector.shape_cast %19 : vector<2x8xf32> to vector<2x8x1xf32>
    %21 = vector.broadcast %20 : vector<2x8x1xf32> to vector<2x8x8xf32>
    %22 = arith.subf %18, %21 : vector<2x8x8xf32>
    %23 = math.exp %22 : vector<2x8x8xf32>
    %cst_14 = arith.constant dense<0.000000e+00> : vector<2x8xf32>
    %24 = vector.multi_reduction <add>, %23, %cst_14 [2] : vector<2x8x8xf32> to vector<2x8xf32>
    %25 = vector.shape_cast %24 : vector<2x8xf32> to vector<2x8x1xf32>
    %26 = tpu.reciprocal %25 : vector<2x8x1xf32> -> vector<2x8x1xf32>
    %27 = vector.broadcast %26 : vector<2x8x1xf32> to vector<2x8x8xf32>
    %28 = arith.mulf %23, %27 : vector<2x8x8xf32>
    "tpu.trace_start"() <{level = 10 : i32, message = "bqk,bkd->bqd"}> : () -> ()
    %cst_15 = arith.constant dense<0.000000e+00> : vector<2x8x8xf32>
    %29 = tpu.matmul %28, %13, %cst_15 {dimension_numbers = #tpu.dot_dimension_numbers<[2], [1], [1], [2], [0, 0, 0, 1, 1, 2], [0], [0]>} : vector<2x8x8xf32>, vector<2x8x8xf32>, vector<2x8x8xf32> -> vector<2x8x8xf32>
    "tpu.trace_stop"() : () -> ()
    %30 = vector.shape_cast %29 : vector<2x8x8xf32> to vector<16x8xf32>
    %c0_16 = arith.constant 0 : index
    %c0_17 = arith.constant 0 : index
    %31 = vector.load %arg10[%c0_16, %c0_17] : memref<16x32xf32, #tpu.memory_space<vmem>>, vector<16x8xf32>
    tpu.vector_store %arg10[%c0_16, %c0_17], %30 {strides = array<i32>} : memref<16x32xf32, #tpu.memory_space<vmem>>, vector<16x8xf32>,
    %32 = vector.extract_strided_slice %6 {offsets = [0, 8], sizes = [16, 8], strides = [1, 1]} : vector<16x96xf32> to vector<16x8xf32>
    %33 = vector.shape_cast %32 : vector<16x8xf32> to vector<2x8x8xf32>
    %34 = vector.extract_strided_slice %6 {offsets = [0, 40], sizes = [16, 8], strides = [1, 1]} : vector<16x96xf32> to vector<16x8xf32>
    %35 = vector.shape_cast %34 : vector<16x8xf32> to vector<2x8x8xf32>
    %36 = vector.extract_strided_slice %6 {offsets = [0, 72], sizes = [16, 8], strides = [1, 1]} : vector<16x96xf32> to vector<16x8xf32>
    %37 = vector.shape_cast %36 : vector<16x8xf32> to vector<2x8x8xf32>
    "tpu.trace_start"() <{level = 10 : i32, message = "bqd,bkd->bqk"}> : () -> ()
    %cst_18 = arith.constant dense<0.000000e+00> : vector<2x8x8xf32>
    %38 = tpu.matmul %33, %35, %cst_18 {dimension_numbers = #tpu.dot_dimension_numbers<[2], [2], [1], [1], [0, 0, 0, 1, 1, 1], [0], [0]>} : vector<2x8x8xf32>, vector<2x8x8xf32>, vector<2x8x8xf32> -> vector<2x8x8xf32>
    "tpu.trace_stop"() : () -> ()
    %c1 = arith.constant 1 : index
    %c0_19 = arith.constant 0 : index
    %c0_20 = arith.constant 0 : index
    %39 = vector.load %arg7[%c1, %c0_19, %c0_20] : memref<4x8x8xf32, #tpu.memory_space<vmem>>, vector<1x8x8xf32>
    %40 = vector.broadcast %39 : vector<1x8x8xf32> to vector<2x8x8xf32>
    %41 = arith.addf %38, %40 : vector<2x8x8xf32>
    %42 = arith.addf %41, %7 : vector<2x8x8xf32>
    %cst_21 = arith.constant dense<0xFF800000> : vector<2x8xf32>
    %43 = vector.multi_reduction <maximumf>, %42, %cst_21 [2] : vector<2x8x8xf32> to vector<2x8xf32>
    %44 = vector.shape_cast %43 : vector<2x8xf32> to vector<2x8x1xf32>
    %45 = vector.broadcast %44 : vector<2x8x1xf32> to vector<2x8x8xf32>
    %46 = arith.subf %42, %45 : vector<2x8x8xf32>
    %47 = math.exp %46 : vector<2x8x8xf32>
    %cst_22 = arith.constant dense<0.000000e+00> : vector<2x8xf32>
    %48 = vector.multi_reduction <add>, %47, %cst_22 [2] : vector<2x8x8xf32> to vector<2x8xf32>
    %49 = vector.shape_cast %48 : vector<2x8xf32> to vector<2x8x1xf32>
    %50 = tpu.reciprocal %49 : vector<2x8x1xf32> -> vector<2x8x1xf32>
    %51 = vector.broadcast %50 : vector<2x8x1xf32> to vector<2x8x8xf32>
    %52 = arith.mulf %47, %51 : vector<2x8x8xf32>
    "tpu.trace_start"() <{level = 10 : i32, message = "bqk,bkd->bqd"}> : () -> ()
    %cst_23 = arith.constant dense<0.000000e+00> : vector<2x8x8xf32>
    %53 = tpu.matmul %52, %37, %cst_23 {dimension_numbers = #tpu.dot_dimension_numbers<[2], [1], [1], [2], [0, 0, 0, 1, 1, 2], [0], [0]>} : vector<2x8x8xf32>, vector<2x8x8xf32>, vector<2x8x8xf32> -> vector<2x8x8xf32>
    "tpu.trace_stop"() : () -> ()
    %54 = vector.shape_cast %53 : vector<2x8x8xf32> to vector<16x8xf32>
    %c0_24 = arith.constant 0 : index
    %c8 = arith.constant 8 : index
    %55 = vector.load %arg10[%c0_24, %c8] : memref<16x32xf32, #tpu.memory_space<vmem>>, vector<16x8xf32>
    tpu.vector_store %arg10[%c0_24, %c8], %54 {strides = array<i32>} : memref<16x32xf32, #tpu.memory_space<vmem>>, vector<16x8xf32>,
    %56 = vector.extract_strided_slice %6 {offsets = [0, 16], sizes = [16, 8], strides = [1, 1]} : vector<16x96xf32> to vector<16x8xf32>
    %57 = vector.shape_cast %56 : vector<16x8xf32> to vector<2x8x8xf32>
    %58 = vector.extract_strided_slice %6 {offsets = [0, 48], sizes = [16, 8], strides = [1, 1]} : vector<16x96xf32> to vector<16x8xf32>
    %59 = vector.shape_cast %58 : vector<16x8xf32> to vector<2x8x8xf32>
    %60 = vector.extract_strided_slice %6 {offsets = [0, 80], sizes = [16, 8], strides = [1, 1]} : vector<16x96xf32> to vector<16x8xf32>
    %61 = vector.shape_cast %60 : vector<16x8xf32> to vector<2x8x8xf32>
    "tpu.trace_start"() <{level = 10 : i32, message = "bqd,bkd->bqk"}> : () -> ()
    %cst_25 = arith.constant dense<0.000000e+00> : vector<2x8x8xf32>
    %62 = tpu.matmul %57, %59, %cst_25 {dimension_numbers = #tpu.dot_dimension_numbers<[2], [2], [1], [1], [0, 0, 0, 1, 1, 1], [0], [0]>} : vector<2x8x8xf32>, vector<2x8x8xf32>, vector<2x8x8xf32> -> vector<2x8x8xf32>
    "tpu.trace_stop"() : () -> ()
    %c2 = arith.constant 2 : index
    %c0_26 = arith.constant 0 : index
    %c0_27 = arith.constant 0 : index
    %63 = vector.load %arg7[%c2, %c0_26, %c0_27] : memref<4x8x8xf32, #tpu.memory_space<vmem>>, vector<1x8x8xf32>
    %64 = vector.broadcast %63 : vector<1x8x8xf32> to vector<2x8x8xf32>
    %65 = arith.addf %62, %64 : vector<2x8x8xf32>
    %66 = arith.addf %65, %7 : vector<2x8x8xf32>
    %cst_28 = arith.constant dense<0xFF800000> : vector<2x8xf32>
    %67 = vector.multi_reduction <maximumf>, %66, %cst_28 [2] : vector<2x8x8xf32> to vector<2x8xf32>
    %68 = vector.shape_cast %67 : vector<2x8xf32> to vector<2x8x1xf32>
    %69 = vector.broadcast %68 : vector<2x8x1xf32> to vector<2x8x8xf32>
    %70 = arith.subf %66, %69 : vector<2x8x8xf32>
    %71 = math.exp %70 : vector<2x8x8xf32>
    %cst_29 = arith.constant dense<0.000000e+00> : vector<2x8xf32>
    %72 = vector.multi_reduction <add>, %71, %cst_29 [2] : vector<2x8x8xf32> to vector<2x8xf32>
    %73 = vector.shape_cast %72 : vector<2x8xf32> to vector<2x8x1xf32>
    %74 = tpu.reciprocal %73 : vector<2x8x1xf32> -> vector<2x8x1xf32>
    %75 = vector.broadcast %74 : vector<2x8x1xf32> to vector<2x8x8xf32>
    %76 = arith.mulf %71, %75 : vector<2x8x8xf32>
    "tpu.trace_start"() <{level = 10 : i32, message = "bqk,bkd->bqd"}> : () -> ()
    %cst_30 = arith.constant dense<0.000000e+00> : vector<2x8x8xf32>
    %77 = tpu.matmul %76, %61, %cst_30 {dimension_numbers = #tpu.dot_dimension_numbers<[2], [1], [1], [2], [0, 0, 0, 1, 1, 2], [0], [0]>} : vector<2x8x8xf32>, vector<2x8x8xf32>, vector<2x8x8xf32> -> vector<2x8x8xf32>
    "tpu.trace_stop"() : () -> ()
    %78 = vector.shape_cast %77 : vector<2x8x8xf32> to vector<16x8xf32>
    %c0_31 = arith.constant 0 : index
    %c16 = arith.constant 16 : index
    %79 = vector.load %arg10[%c0_31, %c16] : memref<16x32xf32, #tpu.memory_space<vmem>>, vector<16x8xf32>
    tpu.vector_store %arg10[%c0_31, %c16], %78 {strides = array<i32>} : memref<16x32xf32, #tpu.memory_space<vmem>>, vector<16x8xf32>,
    %80 = vector.extract_strided_slice %6 {offsets = [0, 24], sizes = [16, 8], strides = [1, 1]} : vector<16x96xf32> to vector<16x8xf32>
    %81 = vector.shape_cast %80 : vector<16x8xf32> to vector<2x8x8xf32>
    %82 = vector.extract_strided_slice %6 {offsets = [0, 56], sizes = [16, 8], strides = [1, 1]} : vector<16x96xf32> to vector<16x8xf32>
    %83 = vector.shape_cast %82 : vector<16x8xf32> to vector<2x8x8xf32>
    %84 = vector.extract_strided_slice %6 {offsets = [0, 88], sizes = [16, 8], strides = [1, 1]} : vector<16x96xf32> to vector<16x8xf32>
    %85 = vector.shape_cast %84 : vector<16x8xf32> to vector<2x8x8xf32>
    "tpu.trace_start"() <{level = 10 : i32, message = "bqd,bkd->bqk"}> : () -> ()
    %cst_32 = arith.constant dense<0.000000e+00> : vector<2x8x8xf32>
    %86 = tpu.matmul %81, %83, %cst_32 {dimension_numbers = #tpu.dot_dimension_numbers<[2], [2], [1], [1], [0, 0, 0, 1, 1, 1], [0], [0]>} : vector<2x8x8xf32>, vector<2x8x8xf32>, vector<2x8x8xf32> -> vector<2x8x8xf32>
    "tpu.trace_stop"() : () -> ()
    %c3 = arith.constant 3 : index
    %c0_33 = arith.constant 0 : index
    %c0_34 = arith.constant 0 : index
    %87 = vector.load %arg7[%c3, %c0_33, %c0_34] : memref<4x8x8xf32, #tpu.memory_space<vmem>>, vector<1x8x8xf32>
    %88 = vector.broadcast %87 : vector<1x8x8xf32> to vector<2x8x8xf32>
    %89 = arith.addf %86, %88 : vector<2x8x8xf32>
    %90 = arith.addf %89, %7 : vector<2x8x8xf32>
    %cst_35 = arith.constant dense<0xFF800000> : vector<2x8xf32>
    %91 = vector.multi_reduction <maximumf>, %90, %cst_35 [2] : vector<2x8x8xf32> to vector<2x8xf32>
    %92 = vector.shape_cast %91 : vector<2x8xf32> to vector<2x8x1xf32>
    %93 = vector.broadcast %92 : vector<2x8x1xf32> to vector<2x8x8xf32>
    %94 = arith.subf %90, %93 : vector<2x8x8xf32>
    %95 = math.exp %94 : vector<2x8x8xf32>
    %cst_36 = arith.constant dense<0.000000e+00> : vector<2x8xf32>
    %96 = vector.multi_reduction <add>, %95, %cst_36 [2] : vector<2x8x8xf32> to vector<2x8xf32>
    %97 = vector.shape_cast %96 : vector<2x8xf32> to vector<2x8x1xf32>
    %98 = tpu.reciprocal %97 : vector<2x8x1xf32> -> vector<2x8x1xf32>
    %99 = vector.broadcast %98 : vector<2x8x1xf32> to vector<2x8x8xf32>
    %100 = arith.mulf %95, %99 : vector<2x8x8xf32>
    "tpu.trace_start"() <{level = 10 : i32, message = "bqk,bkd->bqd"}> : () -> ()
    %cst_37 = arith.constant dense<0.000000e+00> : vector<2x8x8xf32>
    %101 = tpu.matmul %100, %85, %cst_37 {dimension_numbers = #tpu.dot_dimension_numbers<[2], [1], [1], [2], [0, 0, 0, 1, 1, 2], [0], [0]>} : vector<2x8x8xf32>, vector<2x8x8xf32>, vector<2x8x8xf32> -> vector<2x8x8xf32>
    "tpu.trace_stop"() : () -> ()
    %102 = vector.shape_cast %101 : vector<2x8x8xf32> to vector<16x8xf32>
    %c0_38 = arith.constant 0 : index
    %c24 = arith.constant 24 : index
    %103 = vector.load %arg10[%c0_38, %c24] : memref<16x32xf32, #tpu.memory_space<vmem>>, vector<16x8xf32>
    tpu.vector_store %arg10[%c0_38, %c24], %102 {strides = array<i32>} : memref<16x32xf32, #tpu.memory_space<vmem>>, vector<16x8xf32>,
    %c0_39 = arith.constant 0 : index
    %c0_40 = arith.constant 0 : index
    %104 = vector.load %arg10[%c0_39, %c0_40] : memref<16x32xf32, #tpu.memory_space<vmem>>, vector<16x32xf32>
    %c0_41 = arith.constant 0 : index
    %c0_42 = arith.constant 0 : index
    %105 = vector.load %arg5[%c0_41, %c0_42] : memref<32x32xf32, #tpu.memory_space<vmem>>, vector<32x32xf32>
    %cst_43 = arith.constant dense<0.000000e+00> : vector<16x32xf32>
    %106 = tpu.matmul %104, %105, %cst_43 {dimension_numbers = #tpu.dot_dimension_numbers<[1], [0], [0], [1], [0, 0, 1, 1], [], []>} : vector<16x32xf32>, vector<32x32xf32>, vector<16x32xf32> -> vector<16x32xf32>
    %c0_44 = arith.constant 0 : index
    %c0_45 = arith.constant 0 : index
    %107 = vector.load %arg6[%c0_44, %c0_45] : memref<1x32xf32, #tpu.memory_space<vmem>>, vector<1x32xf32>
    %108 = vector.broadcast %107 : vector<1x32xf32> to vector<16x32xf32>
    %109 = arith.addf %106, %108 : vector<16x32xf32>
    %c0_46 = arith.constant 0 : index
    %c0_47 = arith.constant 0 : index
    %c0_48 = arith.constant 0 : index
    %110 = vector.load %arg9[%c0_46, %c0_47, %c0_48] : memref<1x16x32xf32, #tpu.memory_space<vmem>>, vector<1x16x32xf32>
    %111 = vector.shape_cast %110 : vector<1x16x32xf32> to vector<16x32xf32>
    %112 = vector.shape_cast %109 : vector<16x32xf32> to vector<1x16x32xf32>
    tpu.vector_store %arg9[%c0_46, %c0_47, %c0_48], %112 {strides = array<i32>} : memref<1x16x32xf32, #tpu.memory_space<vmem>>, vector<1x16x32xf32>,
    return
  }
  func.func @transform_0(%arg0: i32, %arg1: i32) -> (i32, i32, i32) {
    %c0_i32 = arith.constant 0 : i32
    %c0_i32_0 = arith.constant 0 : i32
    return %arg0, %arg1, %c0_i32 : i32, i32, i32
  }
  func.func @transform_1(%arg0: i32, %arg1: i32) -> (i32, i32) {
    %c0_i32 = arith.constant 0 : i32
    %c0_i32_0 = arith.constant 0 : i32
    %c0_i32_1 = arith.constant 0 : i32
    return %c0_i32, %c0_i32_0 : i32, i32
  }
  func.func @transform_2(%arg0: i32, %arg1: i32) -> (i32, i32) {
    %c0_i32 = arith.constant 0 : i32
    %c0_i32_0 = arith.constant 0 : i32
    %c0_i32_1 = arith.constant 0 : i32
    return %c0_i32, %c0_i32_0 : i32, i32
  }
  func.func @transform_3(%arg0: i32, %arg1: i32) -> (i32, i32) {
    %c0_i32 = arith.constant 0 : i32
    %c0_i32_0 = arith.constant 0 : i32
    %c0_i32_1 = arith.constant 0 : i32
    return %c0_i32, %c0_i32_0 : i32, i32
  }
  func.func @transform_4(%arg0: i32, %arg1: i32) -> (i32, i32) {
    %c0_i32 = arith.constant 0 : i32
    %c0_i32_0 = arith.constant 0 : i32
    %c0_i32_1 = arith.constant 0 : i32
    return %c0_i32, %c0_i32_0 : i32, i32
  }
  func.func @transform_5(%arg0: i32, %arg1: i32) -> (i32, i32, i32) {
    %c0_i32 = arith.constant 0 : i32
    %c0_i32_0 = arith.constant 0 : i32
    %c0_i32_1 = arith.constant 0 : i32
    %c0_i32_2 = arith.constant 0 : i32
    return %c0_i32, %c0_i32_0, %c0_i32_1 : i32, i32, i32
  }
  func.func @transform_6(%arg0: i32, %arg1: i32) -> (i32, i32, i32) {
    %c0_i32 = arith.constant 0 : i32
    %c0_i32_0 = arith.constant 0 : i32
    %c0_i32_1 = arith.constant 0 : i32
    return %arg1, %c0_i32, %c0_i32_0 : i32, i32, i32
  }
  func.func @transform_7(%arg0: i32, %arg1: i32) -> (i32, i32, i32) {
    %c0_i32 = arith.constant 0 : i32
    %c0_i32_0 = arith.constant 0 : i32
    return %arg0, %arg1, %c0_i32 : i32, i32, i32
  }
}

</mosaic_0001>

<llo_original>
// kernel: tpu_custom_call.1
$region0: #{tpu_custom_call.1}
  #allocation0 [shape = 'u32[]', space=smem, size = 0x4, offset = 0x4, fixed_abs, tag = 'smem constant byte address 0x4 - core index']
  #allocation1 [shape = 'u32[72,128]{1,0:T(1,128)}', space=vmem, size = 0x9000, scoped, tag = 'internal scratch']
  #allocation2 [shape = 'f32[16,32]{1,0:T(8,128)}', space=vmem, size = 0x2000, scoped, tag = 'scratch operand']
  %s0 = inlined_call_operand.hbm [shape: f32[2,16,32], index: 0, kind: input, shape index: {}]
  %s1 = inlined_call_operand.hbm [shape: f32[32,96], index: 1, kind: input, shape index: {}]
  %s2 = inlined_call_operand.vmem [shape: f32[1,96], index: 2, kind: input, shape index: {}]
  %s3 = inlined_call_operand.hbm [shape: f32[32,32], index: 3, kind: input, shape index: {}]
  %s4 = inlined_call_operand.vmem [shape: f32[1,32], index: 4, kind: input, shape index: {}]
  %s5 = inlined_call_operand.hbm [shape: f32[4,8,8], index: 5, kind: input, shape index: {}]
  %s6 = inlined_call_operand.hbm [shape: f32[2,8,8], index: 6, kind: input, shape index: {}]
  %s7 = inlined_call_operand.hbm [shape: f32[2,16,32], index: 7, kind: output, shape index: {}]
  %s8 = sld [smem:[#allocation0]]
  $region81: #{tpu_custom_call.1} parent=0
    _
  %s10 = ssub.s32 1, %s8
  %s11 = scalar_select 0, %s10, %s8
  $region1: #{tpu_custom_call.1} parent=0
    #allocation3 [shape = 'u8[16384]{0}', space=vmem, size = 0x4000, scoped, tag = 'input window, operand 0']
    #allocation4 [shape = 's32[2]{0}', space=sflag, size = 0x8, scoped, tag = 'scoped memory for tpu_custom_call.1']
    #allocation5 [shape = 's32[2]{0}', space=sflag, size = 0x8, scoped, tag = 'scoped memory for tpu_custom_call.1']
    #allocation6 [shape = 'u8[16384]{0}', space=vmem, size = 0x4000, scoped, tag = 'input window, operand 1, single buffered']
    #allocation7 [shape = 's32[1]{0}', space=sflag, size = 0x4, scoped, tag = 'scoped memory for tpu_custom_call.1']
    #allocation8 [shape = 'u8[16384]{0}', space=vmem, size = 0x4000, scoped, tag = 'input window, operand 3, single buffered']
    #allocation9 [shape = 'u8[16384]{0}', space=vmem, size = 0x4000, scoped, tag = 'input window, operand 5, single buffered']
    #allocation10 [shape = 's32[1]{0}', space=sflag, size = 0x4, scoped, tag = 'scoped memory for tpu_custom_call.1']
    #allocation11 [shape = 'u8[8192]{0}', space=vmem, size = 0x2000, scoped, tag = 'input window, operand 6, single buffered']
    #allocation12 [shape = 'u8[16384]{0}', space=vmem, size = 0x4000, scoped, tag = 'output window, operand 0']
    %12 = vsyncpa [#allocation4], 0
    %s13 = scalar_lea.sflag [#allocation4], 1
    %14 = vsyncpa %s13, 0
    %15 = vsyncpa [#allocation7], 0
    %16 = vsyncpa [#allocation10], 0
    %17 = vsyncpa [#allocation5], 0
    %s18 = scalar_lea.sflag [#allocation5], 1
    %19 = vsyncpa %s18, 0
    loop: start=0, step=1, limit=4
    $region2: #{tpu_custom_call.1} parent=1 // loop_pre_header
      _
    $region3: #{tpu_custom_call.1} parent=1 // loop_header
      %s21 = sphi 0, %s25
      %p22 = scmp.ge.s32.totalorder %s21, 4
      %s28 = sphi 0, %s40
      %s29 = sphi 0, %s36
      %s30 = sphi 0, %s28
      %s31 = sphi 0, %s29
      %s32 = sphi 0, %s30
      %s33 = sphi 0, %s31
      %s45 = sphi 0, %s47
      %s48 = sphi 0, %s45
      %s49 = sphi 0, %s48
      %s65 = sphi 0, %s49
      %s69 = sphi 0, %s69
      %s71 = sphi 0, %s69
      %s72 = sphi 0, %s71
      %s86 = sphi 0, %s72
      %s90 = sphi 0, %s90
      %s92 = sphi 0, %s90
      %s93 = sphi 0, %s92
      %s107 = sphi 0, %s93
      %s111 = sphi 0, %s111
      %s113 = sphi 0, %s111
      %s114 = sphi 0, %s113
      %s128 = sphi 0, %s114
      %s132 = sphi 0, %s132
      %s134 = sphi 0, %s132
      %s135 = sphi 0, %s134
      %s149 = sphi 0, %s135
      %s153 = sphi 0, %s153
      %s155 = sphi 0, %s153
      %s156 = sphi 0, %s155
      %s170 = sphi 0, %s156
      %s176 = sphi 0, %s178
      %s179 = sphi 0, %s176
      %s180 = sphi 0, %s179
      %s196 = sphi 0, %s180
      %s204 = sphi 0, %s206
      %s207 = sphi 0, %s204
      %s208 = sphi 0, %s207
      %s224 = sphi 0, %s208
    $region4: #{tpu_custom_call.1} parent=1 // loop_header_branch
      %24 = sbr.rel (%p22) target = $region8
    $region5: #{tpu_custom_call.1} parent=1 // loop_body
      %s26 = ssub.s32 %s21, 1
      %s27 = ssub.s32 %s21, 2
      %s34 = sadd.s32 1, %s29
      %p35 = scmp.ge.s32.totalorder %s34, 1
      %s36 = scalar_select %p35, 0, %s34
      %s37 = sadd.s32 1, %s28
      %s38 = scalar_select %p35, %s37, %s28
      %p39 = scmp.ge.s32.totalorder %s38, 2
      %s40 = scalar_select %p39, 0, %s38
      %s41 = ssub.s32 %s28, %s40
      %s42 = ssub.s32 %s29, %s36
      %s43 = sor.u32 %s41, %s42
      %p44 = scmp.eq.s32.totalorder %s43, 0
      %s46 = sadd.s32 %s45, 1
      %s47 = scalar_select %p44, %s45, %s46
      %p50 = pneg %p44
      %p51 = scmp.eq.s32.totalorder %s21, 1
      %p52 = por %p50, %p51
      %p53 = scmp.ne.s32.totalorder %s45, %s48
      %p54 = scmp.eq.s32.totalorder %s21, 0
      %p55 = por %p53, %p54
      %p56 = scmp.ne.s32.totalorder %s45, %s48
      %p57 = scmp.eq.s32.totalorder %s26, 1
      %p58 = por %p56, %p57
      %p59 = scmp.ne.s32.totalorder %s48, %s49
      %p60 = scmp.eq.s32.totalorder %s26, 0
      %p61 = por %p59, %p60
      %p62 = scmp.ne.s32.totalorder %s48, %s49
      %p63 = scmp.eq.s32.totalorder %s27, 1
      %p64 = por %p62, %p63
      %p66 = scmp.ne.s32.totalorder %s49, %s65
      %p67 = scmp.eq.s32.totalorder %s27, 0
      %p68 = por %p66, %p67
      %s70 = sadd.s32 %s69, 1
      %p73 = scmp.eq.s32.totalorder %s21, 1
      %p74 = scmp.ne.s32.totalorder %s69, %s71
      %p75 = scmp.eq.s32.totalorder %s21, 0
      %p76 = por %p74, %p75
      %p77 = scmp.ne.s32.totalorder %s69, %s71
      %p78 = scmp.eq.s32.totalorder %s26, 1
      %p79 = por %p77, %p78
      %p80 = scmp.ne.s32.totalorder %s71, %s72
      %p81 = scmp.eq.s32.totalorder %s26, 0
      %p82 = por %p80, %p81
      %p83 = scmp.ne.s32.totalorder %s71, %s72
      %p84 = scmp.eq.s32.totalorder %s27, 1
      %p85 = por %p83, %p84
      %p87 = scmp.ne.s32.totalorder %s72, %s86
      %p88 = scmp.eq.s32.totalorder %s27, 0
      %p89 = por %p87, %p88
      %s91 = sadd.s32 %s90, 1
      %p94 = scmp.eq.s32.totalorder %s21, 1
      %p95 = scmp.ne.s32.totalorder %s90, %s92
      %p96 = scmp.eq.s32.totalorder %s21, 0
      %p97 = por %p95, %p96
      %p98 = scmp.ne.s32.totalorder %s90, %s92
      %p99 = scmp.eq.s32.totalorder %s26, 1
      %p100 = por %p98, %p99
      %p101 = scmp.ne.s32.totalorder %s92, %s93
      %p102 = scmp.eq.s32.totalorder %s26, 0
      %p103 = por %p101, %p102
      %p104 = scmp.ne.s32.totalorder %s92, %s93
      %p105 = scmp.eq.s32.totalorder %s27, 1
      %p106 = por %p104, %p105
      %p108 = scmp.ne.s32.totalorder %s93, %s107
      %p109 = scmp.eq.s32.totalorder %s27, 0
      %p110 = por %p108, %p109
      %s112 = sadd.s32 %s111, 1
      %p115 = scmp.eq.s32.totalorder %s21, 1
      %p116 = scmp.ne.s32.totalorder %s111, %s113
      %p117 = scmp.eq.s32.totalorder %s21, 0
      %p118 = por %p116, %p117
      %p119 = scmp.ne.s32.totalorder %s111, %s113
      %p120 = scmp.eq.s32.totalorder %s26, 1
      %p121 = por %p119, %p120
      %p122 = scmp.ne.s32.totalorder %s113, %s114
      %p123 = scmp.eq.s32.totalorder %s26, 0
      %p124 = por %p122, %p123
      %p125 = scmp.ne.s32.totalorder %s113, %s114
      %p126 = scmp.eq.s32.totalorder %s27, 1
      %p127 = por %p125, %p126
      %p129 = scmp.ne.s32.totalorder %s114, %s128
      %p130 = scmp.eq.s32.totalorder %s27, 0
      %p131 = por %p129, %p130
      %s133 = sadd.s32 %s132, 1
      %p136 = scmp.eq.s32.totalorder %s21, 1
      %p137 = scmp.ne.s32.totalorder %s132, %s134
      %p138 = scmp.eq.s32.totalorder %s21, 0
      %p139 = por %p137, %p138
      %p140 = scmp.ne.s32.totalorder %s132, %s134
      %p141 = scmp.eq.s32.totalorder %s26, 1
      %p142 = por %p140, %p141
      %p143 = scmp.ne.s32.totalorder %s134, %s135
      %p144 = scmp.eq.s32.totalorder %s26, 0
      %p145 = por %p143, %p144
      %p146 = scmp.ne.s32.totalorder %s134, %s135
      %p147 = scmp.eq.s32.totalorder %s27, 1
      %p148 = por %p146, %p147
      %p150 = scmp.ne.s32.totalorder %s135, %s149
      %p151 = scmp.eq.s32.totalorder %s27, 0
      %p152 = por %p150, %p151
      %s154 = sadd.s32 %s153, 1
      %p157 = scmp.eq.s32.totalorder %s21, 1
      %p158 = scmp.ne.s32.totalorder %s153, %s155
      %p159 = scmp.eq.s32.totalorder %s21, 0
      %p160 = por %p158, %p159
      %p161 = scmp.ne.s32.totalorder %s153, %s155
      %p162 = scmp.eq.s32.totalorder %s26, 1
      %p163 = por %p161, %p162
      %p164 = scmp.ne.s32.totalorder %s155, %s156
      %p165 = scmp.eq.s32.totalorder %s26, 0
      %p166 = por %p164, %p165
      %p167 = scmp.ne.s32.totalorder %s155, %s156
      %p168 = scmp.eq.s32.totalorder %s27, 1
      %p169 = por %p167, %p168
      %p171 = scmp.ne.s32.totalorder %s156, %s170
      %p172 = scmp.eq.s32.totalorder %s27, 0
      %p173 = por %p171, %p172
      %s174 = ssub.s32 %s29, %s36
      %p175 = scmp.eq.s32.totalorder %s174, 0
      %s177 = sadd.s32 %s176, 1
      %s178 = scalar_select %p175, %s176, %s177
      %p181 = pneg %p175
      %p182 = scmp.eq.s32.totalorder %s21, 1
      %p183 = por %p181, %p182
      %p184 = scmp.ne.s32.totalorder %s176, %s179
      %p185 = scmp.eq.s32.totalorder %s21, 0
      %p186 = por %p184, %p185
      %p187 = scmp.ne.s32.totalorder %s176, %s179
      %p188 = scmp.eq.s32.totalorder %s26, 1
      %p189 = por %p187, %p188
      %p190 = scmp.ne.s32.totalorder %s179, %s180
      %p191 = scmp.eq.s32.totalorder %s26, 0
      %p192 = por %p190, %p191
      %p193 = scmp.ne.s32.totalorder %s179, %s180
      %p194 = scmp.eq.s32.totalorder %s27, 1
      %p195 = por %p193, %p194
      %p197 = scmp.ne.s32.totalorder %s180, %s196
      %p198 = scmp.eq.s32.totalorder %s27, 0
      %p199 = por %p197, %p198
      %s200 = ssub.s32 %s28, %s40
      %s201 = ssub.s32 %s29, %s36
      %s202 = sor.u32 %s200, %s201
      %p203 = scmp.eq.s32.totalorder %s202, 0
      %s205 = sadd.s32 %s204, 1
      %s206 = scalar_select %p203, %s204, %s205
      %p209 = pneg %p203
      %p210 = scmp.eq.s32.totalorder %s21, 1
      %p211 = por %p209, %p210
      %p212 = scmp.ne.s32.totalorder %s204, %s207
      %p213 = scmp.eq.s32.totalorder %s21, 0
      %p214 = por %p212, %p213
      %p215 = scmp.ne.s32.totalorder %s204, %s207
      %p216 = scmp.eq.s32.totalorder %s26, 1
      %p217 = por %p215, %p216
      %p218 = scmp.ne.s32.totalorder %s207, %s208
      %p219 = scmp.eq.s32.totalorder %s26, 0
      %p220 = por %p218, %p219
      %p221 = scmp.ne.s32.totalorder %s207, %s208
      %p222 = scmp.eq.s32.totalorder %s27, 1
      %p223 = por %p221, %p222
      %p225 = scmp.ne.s32.totalorder %s208, %s224
      %p226 = scmp.eq.s32.totalorder %s27, 0
      %p227 = por %p225, %p226
      %p228 = scmp.le.s32.totalorder 1, %s21
      %p229 = scmp.lt.s32.totalorder %s21, 3
      %p230 = pnand %p228, %p229
      %p231 = pneg %p230
      // Predicated region
      $region9: #{tpu_custom_call.1} parent=5 // pred_check
        _
      $region10: #{tpu_custom_call.1} parent=5 // pred_check_branch
        %233 = sbr.rel (%p230) target = $region12
      $region11: #{tpu_custom_call.1} parent=5 // pred_region
        %s234 = ssub.s32 %s21, 1
        // Predicated region
        $region13: #{tpu_custom_call.1} parent=11 // pred_check
          %p235 = pneg %p82
        $region14: #{tpu_custom_call.1} parent=11 // pred_check_branch
          %237 = sbr.rel (%p235) target = $region16
        $region15: #{tpu_custom_call.1} parent=11 // pred_region
          %239 = vsyncadd [#allocation7], 0
          %s240 = sshll.u32 %s1, 4
          %s241 = int_to_ptr.hbm [resolvable:$true] %s240
          %s242 = sshll.u32 [#allocation6], 4
          %s243 = int_to_ptr.vmem [resolvable:$true] %s242
          %248 = dma.hbm_to_vmem [thread:$0]  %s241, 512, %s243, [#allocation7], 128, 128, 8
        $region16: #{tpu_custom_call.1} parent=11 // pred_fallthru
          _
        // Predicated region
        $region17: #{tpu_custom_call.1} parent=11 // pred_check
          %p249 = pneg %p103
        $region18: #{tpu_custom_call.1} parent=11 // pred_check_branch
          %251 = sbr.rel (%p249) target = $region20
        $region19: #{tpu_custom_call.1} parent=11 // pred_region
          _
        $region20: #{tpu_custom_call.1} parent=11 // pred_fallthru
          _
        // Predicated region
        $region21: #{tpu_custom_call.1} parent=11 // pred_check
          %p252 = pneg %p124
        $region22: #{tpu_custom_call.1} parent=11 // pred_check_branch
          %254 = sbr.rel (%p252) target = $region24
        $region23: #{tpu_custom_call.1} parent=11 // pred_region
          %256 = vsyncadd [#allocation7], 0
          %s257 = sshll.u32 %s3, 4
          %s258 = int_to_ptr.hbm [resolvable:$true] %s257
          %s259 = sshll.u32 [#allocation8], 4
          %s260 = int_to_ptr.vmem [resolvable:$true] %s259
          %265 = dma.hbm_to_vmem [thread:$0]  %s258, 512, %s260, [#allocation7], 128, 128, 8
        $region24: #{tpu_custom_call.1} parent=11 // pred_fallthru
          _
        // Predicated region
        $region25: #{tpu_custom_call.1} parent=11 // pred_check
          %p266 = pneg %p145
        $region26: #{tpu_custom_call.1} parent=11 // pred_check_branch
          %268 = sbr.rel (%p266) target = $region28
        $region27: #{tpu_custom_call.1} parent=11 // pred_region
          _
        $region28: #{tpu_custom_call.1} parent=11 // pred_fallthru
          _
        // Predicated region
        $region29: #{tpu_custom_call.1} parent=11 // pred_check
          %p269 = pneg %p166
        $region30: #{tpu_custom_call.1} parent=11 // pred_check_branch
          %271 = sbr.rel (%p269) target = $region32
        $region31: #{tpu_custom_call.1} parent=11 // pred_region
          %273 = vsyncadd [#allocation10], 0
          %s274 = sshll.u32 %s5, 4
          %s275 = int_to_ptr.hbm [resolvable:$true] %s274
          %s276 = sshll.u32 [#allocation9], 4
          %s277 = int_to_ptr.vmem [resolvable:$true] %s276
          %282 = dma.hbm_to_vmem [thread:$0]  %s275, 512, %s277, [#allocation10], 128, 128, 8
        $region32: #{tpu_custom_call.1} parent=11 // pred_fallthru
          _
        // Predicated region
        $region33: #{tpu_custom_call.1} parent=11 // pred_check
          %p283 = pneg %p192
        $region34: #{tpu_custom_call.1} parent=11 // pred_check_branch
          %285 = sbr.rel (%p283) target = $region36
        $region35: #{tpu_custom_call.1} parent=11 // pred_region
          %s286 = smul.u32 2, %s31
          %288 = vsyncadd [#allocation10], 0
          %s289 = smul.addr %s286, 8
          %s290 = scalar_lea.hbm %s6, %s289
          %s291 = sshll.u32 %s290, 4
          %s292 = int_to_ptr.hbm [resolvable:$true] %s291
          %s293 = sshll.u32 [#allocation11], 4
          %s294 = int_to_ptr.vmem [resolvable:$true] %s293
          %299 = dma.hbm_to_vmem [thread:$0]  %s292, 256, %s294, [#allocation10], 128, 128, 8
        $region36: #{tpu_custom_call.1} parent=11 // pred_fallthru
          _
      $region12: #{tpu_custom_call.1} parent=5 // pred_fallthru
        _
      %p300 = scmp.lt.s32.totalorder %s21, 2
      // Predicated region
      $region37: #{tpu_custom_call.1} parent=5 // pred_check
        %p301 = pneg %p300
      $region38: #{tpu_custom_call.1} parent=5 // pred_check_branch
        %303 = sbr.rel (%p301) target = $region40
      $region39: #{tpu_custom_call.1} parent=5 // pred_region
        // Predicated region
        $region41: #{tpu_custom_call.1} parent=39 // pred_check
          %p304 = pneg %p55
        $region42: #{tpu_custom_call.1} parent=39 // pred_check_branch
          %306 = sbr.rel (%p304) target = $region44
        $region43: #{tpu_custom_call.1} parent=39 // pred_region
          %s307 = sand.u32 %s45, 1
          %s308 = scalar_lea.sflag [#allocation4], %s307
          %s309 = sand.u32 %s45, 1
          %s310 = smul.addr %s309, 16
          %s311 = scalar_lea.vmem [#allocation3], %s310
          %s312 = smul.u32 2, %s29
          %314 = vsyncadd %s308, 0
          %s315 = smul.addr %s28, 2
          %s316 = sadd.s32 %s312, %s315
          %s317 = smul.addr %s316, 8
          %s318 = scalar_lea.hbm %s0, %s317
          %s319 = sshll.u32 %s318, 4
          %s320 = int_to_ptr.hbm [resolvable:$true] %s319
          %s321 = sshll.u32 %s311, 4
          %s322 = int_to_ptr.vmem [resolvable:$true] %s321
          %327 = dma.hbm_to_vmem [thread:$0]  %s320, 256, %s322, %s308, 128, 128, 8
        $region44: #{tpu_custom_call.1} parent=39 // pred_fallthru
          _
      $region40: #{tpu_custom_call.1} parent=5 // pred_fallthru
        _
      %p328 = scmp.le.s32.totalorder 1, %s21
      %p329 = scmp.lt.s32.totalorder %s21, 3
      %p330 = pnand %p328, %p329
      %p331 = pneg %p330
      // Predicated region
      $region45: #{tpu_custom_call.1} parent=5 // pred_check
        _
      $region46: #{tpu_custom_call.1} parent=5 // pred_check_branch
        %333 = sbr.rel (%p330) target = $region48
      $region47: #{tpu_custom_call.1} parent=5 // pred_region
        %s334 = ssub.s32 %s21, 1
        %s335 = sand.u32 %s48, 1
        %s336 = scalar_lea.sflag [#allocation4], %s335
        %s337 = sand.u32 %s48, 1
        %s338 = smul.addr %s337, 16
        %s339 = scalar_lea.vmem [#allocation3], %s338
        // Predicated region
        $region49: #{tpu_custom_call.1} parent=47 // pred_check
          %p340 = pneg %p61
        $region50: #{tpu_custom_call.1} parent=47 // pred_check_branch
          %342 = sbr.rel (%p340) target = $region52
        $region51: #{tpu_custom_call.1} parent=47 // pred_region
          %344 = dma.done %s336, 256
        $region52: #{tpu_custom_call.1} parent=47 // pred_fallthru
          _
        // Predicated region
        $region53: #{tpu_custom_call.1} parent=47 // pred_check
          %p345 = pneg %p82
        $region54: #{tpu_custom_call.1} parent=47 // pred_check_branch
          %347 = sbr.rel (%p345) target = $region56
        $region55: #{tpu_custom_call.1} parent=47 // pred_region
          %349 = dma.done [#allocation7], 512
        $region56: #{tpu_custom_call.1} parent=47 // pred_fallthru
          _
        // Predicated region
        $region57: #{tpu_custom_call.1} parent=47 // pred_check
          %p350 = pneg %p124
        $region58: #{tpu_custom_call.1} parent=47 // pred_check_branch
          %352 = sbr.rel (%p350) target = $region60
        $region59: #{tpu_custom_call.1} parent=47 // pred_region
          %354 = dma.done [#allocation7], 512
        $region60: #{tpu_custom_call.1} parent=47 // pred_fallthru
          _
        // Predicated region
        $region61: #{tpu_custom_call.1} parent=47 // pred_check
          %p355 = pneg %p166
        $region62: #{tpu_custom_call.1} parent=47 // pred_check_branch
          %357 = sbr.rel (%p355) target = $region64
        $region63: #{tpu_custom_call.1} parent=47 // pred_region
          %359 = dma.done [#allocation10], 512
        $region64: #{tpu_custom_call.1} parent=47 // pred_fallthru
          _
        // Predicated region
        $region65: #{tpu_custom_call.1} parent=47 // pred_check
          %p360 = pneg %p192
        $region66: #{tpu_custom_call.1} parent=47 // pred_check_branch
          %362 = sbr.rel (%p360) target = $region68
        $region67: #{tpu_custom_call.1} parent=47 // pred_region
          %364 = dma.done [#allocation10], 256
        $region68: #{tpu_custom_call.1} parent=47 // pred_fallthru
          _
        %s365 = sand.u32 %s48, 1
        %s366 = scalar_lea.sflag [#allocation4], %s365
        %s367 = sand.u32 %s48, 1
        %s368 = smul.addr %s367, 16
        %s369 = scalar_lea.vmem [#allocation3], %s368
        %p370 = pneg %p61
        %p371 = pneg %p58
        %p372 = pneg %p82
        %p373 = pneg %p79
        %p374 = pneg %p103
        %p375 = pneg %p100
        %p376 = pneg %p124
        %p377 = pneg %p121
        %p378 = pneg %p145
        %p379 = pneg %p142
        %p380 = pneg %p166
        %p381 = pneg %p163
        %p382 = pneg %p192
        %p383 = pneg %p189
        %p384 = pneg %p220
        %p385 = pneg %p217
        %s386 = sand.u32 %s207, 1
        %s387 = scalar_lea.sflag [#allocation5], %s386
        %s388 = sand.u32 %s207, 1
        %s389 = smul.addr %s388, 16
        %s390 = scalar_lea.vmem [#allocation12], %s389
        %s391 = smul.u32 2, %s31
        %s392 = smul.u32 2, %s31
        %s393 = smul.u32 2, %s31
        %v394 = vld [vmem:[%s339] sm:$0xff]
        %v395 = vld [vmem:[%s339 + $0x8] sm:$0xff]
        %v396 = vld [vmem:[#allocation6] sm:$0xff]
        %v397 = vld [vmem:[#allocation6 + $0x8] sm:$0xff]
        %v398 = vld [vmem:[#allocation6 + $0x10] sm:$0xff]
        %v399 = vld [vmem:[#allocation6 + $0x18] sm:$0xff]
        %v400 = vld [vmem:[%s2] sm:$0x1]
        %v402 = vperm.slane %v400, 0
        %vm404 = vcmask 261120
        %v406 = vsel %vm404, %v394, 0
        %v409 = vsel %vm404, %v395, 0
        %411 = vmatpush.msra.mxu0 0.0
        %412 = vmatpush.msra.mxu0 0.0
        %413 = vmatpush.msra.mxu0 0.0
        %414 = vmatpush.msra.mxu0 0.0
        %415 = vmatpush.msra.mxu0 0.0
        %416 = vmatpush.msra.mxu0 0.0
        %417 = vmatpush.msra.mxu0 0.0
        %418 = vmatpush.msra.mxu0 0.0
        %419 = vmatpush.msra.mxu0 0.0
        %420 = vmatpush.msra.mxu0 0.0
        %421 = vmatpush.msra.mxu0 0.0
        %422 = vmatpush.msra.mxu0 0.0
        %423 = vmatpush.msra.mxu0 %v399
        %424 = vmatpush.msra.mxu0 %v398
        %425 = vmatpush.msra.mxu0 %v397
        %426 = vmatpush.msra.mxu0 %v396
        %427 = vmatmul.f32.gmra.mxu0 %v406
        %v428 = vpop.f32.mrf.mxu0
        %v429 = vadd.f32 %v402, %v428
        %430 = vmatmul.f32.gmra.mxu0 %v409
        %v431 = vpop.f32.mrf.mxu0
        %v432 = vadd.f32 %v402, %v431
        %433 = vdwg.mxu0
        %v434 = vld [vmem:[#allocation11] sm:$0xff]
        %v435 = vld [vmem:[#allocation11 + $0x8] sm:$0xff]
        %v436 = vld [vmem:[#allocation9] sm:$0xff]
        %438 = vrot.lane.b32.xlu0 %v429, 96
        %v439 = vpop.permute.xlu0 %438
        %vm440 = vcmask 64512
        %v441 = vsel %vm440, %v429, 0
        %v443 = vsel %vm440, %v439, 0
        %445 = vmatpush.xpose.msra.mxu0 0.0
        %446 = vmatpush.xpose.msra.mxu0 0.0
        %447 = vmatpush.xpose.msra.mxu0 0.0
        %448 = vmatpush.xpose.msra.mxu0 0.0
        %449 = vmatpush.xpose.msra.mxu0 0.0
        %450 = vmatpush.xpose.msra.mxu0 0.0
        %451 = vmatpush.xpose.msra.mxu0 0.0
        %452 = vmatpush.xpose.msra.mxu0 0.0
        %453 = vmatpush.xpose.msra.mxu0 0.0
        %454 = vmatpush.xpose.msra.mxu0 0.0
        %455 = vmatpush.xpose.msra.mxu0 0.0
        %456 = vmatpush.xpose.msra.mxu0 0.0
        %457 = vmatpush.xpose.msra.mxu0 0.0
        %458 = vmatpush.xpose.msra.mxu0 0.0
        %459 = vmatpush.xpose.msra.mxu0 0.0
        %460 = vmatpush.xpose.msra.mxu0 %v443
        %461 = vmatmul.f32.gmra.mxu0 %v441
        %v462 = vpop.f32.mrf.mxu0
        %v463 = vadd.f32 %v436, %v462
        %464 = vdwg.mxu0
        %466 = vrot.lane.b32.xlu0 %v432, 96
        %v467 = vpop.permute.xlu0 %466
        %v468 = vsel %vm440, %v432, 0
        %v470 = vsel %vm440, %v467, 0
        %472 = vmatpush.xpose.msra.mxu0 0.0
        %473 = vmatpush.xpose.msra.mxu0 0.0
        %474 = vmatpush.xpose.msra.mxu0 0.0
        %475 = vmatpush.xpose.msra.mxu0 0.0
        %476 = vmatpush.xpose.msra.mxu0 0.0
        %477 = vmatpush.xpose.msra.mxu0 0.0
        %478 = vmatpush.xpose.msra.mxu0 0.0
        %479 = vmatpush.xpose.msra.mxu0 0.0
        %480 = vmatpush.xpose.msra.mxu0 0.0
        %481 = vmatpush.xpose.msra.mxu0 0.0
        %482 = vmatpush.xpose.msra.mxu0 0.0
        %483 = vmatpush.xpose.msra.mxu0 0.0
        %484 = vmatpush.xpose.msra.mxu0 0.0
        %485 = vmatpush.xpose.msra.mxu0 0.0
        %486 = vmatpush.xpose.msra.mxu0 0.0
        %487 = vmatpush.xpose.msra.mxu0 %v470
        %488 = vmatmul.f32.gmra.mxu0 %v468
        %v489 = vpop.f32.mrf.mxu0
        %v490 = vadd.f32 %v436, %v489
        %491 = vdwg.mxu0
        %v492 = vadd.f32 %v463, %v434
        %v493 = vadd.f32 %v490, %v435
        %v494 = vsel %vm440, %v492, -inf
        %495 = vmax.xlane.f32.xlu0 %v494
        %v496 = vpop.xlane.xlu0 %495
        %v497 = vsel %vm440, %v493, -inf
        %498 = vmax.xlane.f32.xlu0 %v497
        %v499 = vpop.xlane.xlu0 %498
        %v500 = vsub.f32 %v492, %v496
        %v501 = vsub.f32 %v493, %v499
        %v502 = vmul.f32 %v500, 1.442695
        %v503 = vpow.pop %v502
        %v504 = vmul.f32 %v501, 1.442695
        %v505 = vpow.pop %v504
        %v506 = vsel %vm440, %v503, 0.0
        %507 = vadd.xlane.f32.xlu0 %v506
        %v508 = vpop.xlane.xlu0 %507
        %v509 = vsel %vm440, %v505, 0.0
        %510 = vadd.xlane.f32.xlu0 %v509
        %v511 = vpop.xlane.xlu0 %510
        %v512 = vrcp.pop %v508
        %v513 = vmul.f32 %v508, %v512
        %v514 = vsub.f32 1.0, %v513
        %v515 = vmul.f32 %v512, %v514
        %v516 = vadd.f32 %v512, %v515
        %vm517 = vweird.f32 %v508
        %vm518 = vweird.f32 %v512
        %vm519 = vmor %vm517, %vm518
        %v520 = vsel %vm519, %v512, %v516
        %v521 = vand.u32 2147483647, %v508
        %vm522 = vcmp.eq.f32.partialorder %v521, 8.507059e+37
        %v523 = vand.u32 %v508, 2147483648
        %v524 = vor.u32 1.1754944e-38, %v523
        %v525 = vsel %vm522, %v524, %v520
        %v526 = vrcp.pop %v511
        %v527 = vmul.f32 %v511, %v526
        %v528 = vsub.f32 1.0, %v527
        %v529 = vmul.f32 %v526, %v528
        %v530 = vadd.f32 %v526, %v529
        %vm531 = vweird.f32 %v511
        %vm532 = vweird.f32 %v526
        %vm533 = vmor %vm531, %vm532
        %v534 = vsel %vm533, %v526, %v530
        %v535 = vand.u32 2147483647, %v511
        %vm536 = vcmp.eq.f32.partialorder %v535, 8.507059e+37
        %v537 = vand.u32 %v511, 2147483648
        %v538 = vor.u32 1.1754944e-38, %v537
        %v539 = vsel %vm536, %v538, %v534
        %v540 = vmul.f32 %v503, %v525
        %v541 = vmul.f32 %v505, %v539
        %542 = vrot.lane.b32.xlu0 %v429, 64
        %v543 = vpop.permute.xlu0 %542
        %v546 = vsel %vm440, %v540, 0
        %548 = vmatpush.msra.mxu0 0.0
        %549 = vmatpush.msra.mxu0 0.0
        %550 = vmatpush.msra.mxu0 0.0
        %551 = vmatpush.msra.mxu0 0.0
        %552 = vmatpush.msra.mxu0 0.0
        %553 = vmatpush.msra.mxu0 0.0
        %554 = vmatpush.msra.mxu0 0.0
        %555 = vmatpush.msra.mxu0 0.0
        %556 = vmatpush.msra.mxu0 0.0
        %557 = vmatpush.msra.mxu0 0.0
        %558 = vmatpush.msra.mxu0 0.0
        %559 = vmatpush.msra.mxu0 0.0
        %560 = vmatpush.msra.mxu0 0.0
        %561 = vmatpush.msra.mxu0 0.0
        %562 = vmatpush.msra.mxu0 0.0
        %563 = vmatpush.msra.mxu0 %v543
        %564 = vmatmul.f32.gmra.mxu0 %v546
        %v565 = vpop.f32.mrf.mxu0
        %v566 = vadd.f32 0.0, %v565
        %567 = vdwg.mxu0
        %568 = vrot.lane.b32.xlu0 %v432, 64
        %v569 = vpop.permute.xlu0 %568
        %v572 = vsel %vm440, %v541, 0
        %574 = vmatpush.msra.mxu0 0.0
        %575 = vmatpush.msra.mxu0 0.0
        %576 = vmatpush.msra.mxu0 0.0
        %577 = vmatpush.msra.mxu0 0.0
        %578 = vmatpush.msra.mxu0 0.0
        %579 = vmatpush.msra.mxu0 0.0
        %580 = vmatpush.msra.mxu0 0.0
        %581 = vmatpush.msra.mxu0 0.0
        %582 = vmatpush.msra.mxu0 0.0
        %583 = vmatpush.msra.mxu0 0.0
        %584 = vmatpush.msra.mxu0 0.0
        %585 = vmatpush.msra.mxu0 0.0
        %586 = vmatpush.msra.mxu0 0.0
        %587 = vmatpush.msra.mxu0 0.0
        %588 = vmatpush.msra.mxu0 0.0
        %589 = vmatpush.msra.mxu0 %v569
        %590 = vmatmul.f32.gmra.mxu0 %v572
        %v591 = vpop.f32.mrf.mxu0
        %v592 = vadd.f32 0.0, %v591
        %593 = vdwg.mxu0
        %594 = vst.msk [vmem:[#allocation2] sm:$0xff] %vm440, %v566
        %595 = vst.msk [vmem:[#allocation2 + $0x8] sm:$0xff] %vm440, %v592
        %s596 = scalar_lea.vmem [#allocation9], 8
        %v597 = vld [vmem:[%s596] sm:$0xff]
        %598 = vrot.lane.b32.xlu0 %v429, 120
        %v599 = vpop.permute.xlu0 %598
        %600 = vrot.lane.b32.xlu0 %v429, 88
        %v601 = vpop.permute.xlu0 %600
        %v602 = vsel %vm440, %v599, 0
        %v604 = vsel %vm440, %v601, 0
        %606 = vmatpush.xpose.msra.mxu0 0.0
        %607 = vmatpush.xpose.msra.mxu0 0.0
        %608 = vmatpush.xpose.msra.mxu0 0.0
        %609 = vmatpush.xpose.msra.mxu0 0.0
        %610 = vmatpush.xpose.msra.mxu0 0.0
        %611 = vmatpush.xpose.msra.mxu0 0.0
        %612 = vmatpush.xpose.msra.mxu0 0.0
        %613 = vmatpush.xpose.msra.mxu0 0.0
        %614 = vmatpush.xpose.msra.mxu0 0.0
        %615 = vmatpush.xpose.msra.mxu0 0.0
        %616 = vmatpush.xpose.msra.mxu0 0.0
        %617 = vmatpush.xpose.msra.mxu0 0.0
        %618 = vmatpush.xpose.msra.mxu0 0.0
        %619 = vmatpush.xpose.msra.mxu0 0.0
        %620 = vmatpush.xpose.msra.mxu0 0.0
        %621 = vmatpush.xpose.msra.mxu0 %v604
        %622 = vmatmul.f32.gmra.mxu0 %v602
        %v623 = vpop.f32.mrf.mxu0
        %v624 = vadd.f32 %v597, %v623
        %625 = vdwg.mxu0
        %626 = vrot.lane.b32.xlu0 %v432, 120
        %v627 = vpop.permute.xlu0 %626
        %628 = vrot.lane.b32.xlu0 %v432, 88
        %v629 = vpop.permute.xlu0 %628
        %v630 = vsel %vm440, %v627, 0
        %v632 = vsel %vm440, %v629, 0
        %634 = vmatpush.xpose.msra.mxu0 0.0
        %635 = vmatpush.xpose.msra.mxu0 0.0
        %636 = vmatpush.xpose.msra.mxu0 0.0
        %637 = vmatpush.xpose.msra.mxu0 0.0
        %638 = vmatpush.xpose.msra.mxu0 0.0
        %639 = vmatpush.xpose.msra.mxu0 0.0
        %640 = vmatpush.xpose.msra.mxu0 0.0
        %641 = vmatpush.xpose.msra.mxu0 0.0
        %642 = vmatpush.xpose.msra.mxu0 0.0
        %643 = vmatpush.xpose.msra.mxu0 0.0
        %644 = vmatpush.xpose.msra.mxu0 0.0
        %645 = vmatpush.xpose.msra.mxu0 0.0
        %646 = vmatpush.xpose.msra.mxu0 0.0
        %647 = vmatpush.xpose.msra.mxu0 0.0
        %648 = vmatpush.xpose.msra.mxu0 0.0
        %649 = vmatpush.xpose.msra.mxu0 %v632
        %650 = vmatmul.f32.gmra.mxu0 %v630
        %v651 = vpop.f32.mrf.mxu0
        %v652 = vadd.f32 %v597, %v651
        %653 = vdwg.mxu0
        %v654 = vadd.f32 %v624, %v434
        %v655 = vadd.f32 %v652, %v435
        %v656 = vsel %vm440, %v654, -inf
        %657 = vmax.xlane.f32.xlu0 %v656
        %v658 = vpop.xlane.xlu0 %657
        %v659 = vsel %vm440, %v655, -inf
        %660 = vmax.xlane.f32.xlu0 %v659
        %v661 = vpop.xlane.xlu0 %660
        %v662 = vsub.f32 %v654, %v658
        %v663 = vsub.f32 %v655, %v661
        %v664 = vmul.f32 %v662, 1.442695
        %v665 = vpow.pop %v664
        %v666 = vmul.f32 %v663, 1.442695
        %v667 = vpow.pop %v666
        %v668 = vsel %vm440, %v665, 0.0
        %669 = vadd.xlane.f32.xlu0 %v668
        %v670 = vpop.xlane.xlu0 %669
        %v671 = vsel %vm440, %v667, 0.0
        %672 = vadd.xlane.f32.xlu0 %v671
        %v673 = vpop.xlane.xlu0 %672
        %v674 = vrcp.pop %v670
        %v675 = vmul.f32 %v670, %v674
        %v676 = vsub.f32 1.0, %v675
        %v677 = vmul.f32 %v674, %v676
        %v678 = vadd.f32 %v674, %v677
        %vm679 = vweird.f32 %v670
        %vm680 = vweird.f32 %v674
        %vm681 = vmor %vm679, %vm680
        %v682 = vsel %vm681, %v674, %v678
        %v683 = vand.u32 2147483647, %v670
        %vm684 = vcmp.eq.f32.partialorder %v683, 8.507059e+37
        %v685 = vand.u32 %v670, 2147483648
        %v686 = vor.u32 1.1754944e-38, %v685
        %v687 = vsel %vm684, %v686, %v682
        %v688 = vrcp.pop %v673
        %v689 = vmul.f32 %v673, %v688
        %v690 = vsub.f32 1.0, %v689
        %v691 = vmul.f32 %v688, %v690
        %v692 = vadd.f32 %v688, %v691
        %vm693 = vweird.f32 %v673
        %vm694 = vweird.f32 %v688
        %vm695 = vmor %vm693, %vm694
        %v696 = vsel %vm695, %v688, %v692
        %v697 = vand.u32 2147483647, %v673
        %vm698 = vcmp.eq.f32.partialorder %v697, 8.507059e+37
        %v699 = vand.u32 %v673, 2147483648
        %v700 = vor.u32 1.1754944e-38, %v699
        %v701 = vsel %vm698, %v700, %v696
        %v702 = vmul.f32 %v665, %v687
        %v703 = vmul.f32 %v667, %v701
        %704 = vrot.lane.b32.xlu0 %v429, 56
        %v705 = vpop.permute.xlu0 %704
        %v708 = vsel %vm440, %v702, 0
        %710 = vmatpush.msra.mxu0 0.0
        %711 = vmatpush.msra.mxu0 0.0
        %712 = vmatpush.msra.mxu0 0.0
        %713 = vmatpush.msra.mxu0 0.0
        %714 = vmatpush.msra.mxu0 0.0
        %715 = vmatpush.msra.mxu0 0.0
        %716 = vmatpush.msra.mxu0 0.0
        %717 = vmatpush.msra.mxu0 0.0
        %718 = vmatpush.msra.mxu0 0.0
        %719 = vmatpush.msra.mxu0 0.0
        %720 = vmatpush.msra.mxu0 0.0
        %721 = vmatpush.msra.mxu0 0.0
        %722 = vmatpush.msra.mxu0 0.0
        %723 = vmatpush.msra.mxu0 0.0
        %724 = vmatpush.msra.mxu0 0.0
        %725 = vmatpush.msra.mxu0 %v705
        %726 = vmatmul.f32.gmra.mxu0 %v708
        %v727 = vpop.f32.mrf.mxu0
        %v728 = vadd.f32 0.0, %v727
        %729 = vdwg.mxu0
        %730 = vrot.lane.b32.xlu0 %v432, 56
        %v731 = vpop.permute.xlu0 %730
        %v734 = vsel %vm440, %v703, 0
        %736 = vmatpush.msra.mxu0 0.0
        %737 = vmatpush.msra.mxu0 0.0
        %738 = vmatpush.msra.mxu0 0.0
        %739 = vmatpush.msra.mxu0 0.0
        %740 = vmatpush.msra.mxu0 0.0
        %741 = vmatpush.msra.mxu0 0.0
        %742 = vmatpush.msra.mxu0 0.0
        %743 = vmatpush.msra.mxu0 0.0
        %744 = vmatpush.msra.mxu0 0.0
        %745 = vmatpush.msra.mxu0 0.0
        %746 = vmatpush.msra.mxu0 0.0
        %747 = vmatpush.msra.mxu0 0.0
        %748 = vmatpush.msra.mxu0 0.0
        %749 = vmatpush.msra.mxu0 0.0
        %750 = vmatpush.msra.mxu0 0.0
        %751 = vmatpush.msra.mxu0 %v731
        %752 = vmatmul.f32.gmra.mxu0 %v734
        %v753 = vpop.f32.mrf.mxu0
        %v754 = vadd.f32 0.0, %v753
        %755 = vdwg.mxu0
        %758 = vrot.lane.b32.xlu0 %v728, 8
        %v759 = vpop.permute.xlu0 %758
        %760 = vrot.lane.b32.xlu0 %v754, 8
        %v761 = vpop.permute.xlu0 %760
        %vm764 = vcmask 130112
        %765 = vst.msk [vmem:[#allocation2] sm:$0xff] %vm764, %v759
        %766 = vst.msk [vmem:[#allocation2 + $0x8] sm:$0xff] %vm764, %v761
        %s767 = scalar_lea.vmem [#allocation9], 16
        %v768 = vld [vmem:[%s767] sm:$0xff]
        %769 = vrot.lane.b32.xlu0 %v429, 112
        %v770 = vpop.permute.xlu0 %769
        %771 = vrot.lane.b32.xlu0 %v429, 80
        %v772 = vpop.permute.xlu0 %771
        %v773 = vsel %vm440, %v770, 0
        %v775 = vsel %vm440, %v772, 0
        %777 = vmatpush.xpose.msra.mxu0 0.0
        %778 = vmatpush.xpose.msra.mxu0 0.0
        %779 = vmatpush.xpose.msra.mxu0 0.0
        %780 = vmatpush.xpose.msra.mxu0 0.0
        %781 = vmatpush.xpose.msra.mxu0 0.0
        %782 = vmatpush.xpose.msra.mxu0 0.0
        %783 = vmatpush.xpose.msra.mxu0 0.0
        %784 = vmatpush.xpose.msra.mxu0 0.0
        %785 = vmatpush.xpose.msra.mxu0 0.0
        %786 = vmatpush.xpose.msra.mxu0 0.0
        %787 = vmatpush.xpose.msra.mxu0 0.0
        %788 = vmatpush.xpose.msra.mxu0 0.0
        %789 = vmatpush.xpose.msra.mxu0 0.0
        %790 = vmatpush.xpose.msra.mxu0 0.0
        %791 = vmatpush.xpose.msra.mxu0 0.0
        %792 = vmatpush.xpose.msra.mxu0 %v775
        %793 = vmatmul.f32.gmra.mxu0 %v773
        %v794 = vpop.f32.mrf.mxu0
        %v795 = vadd.f32 %v768, %v794
        %796 = vdwg.mxu0
        %797 = vrot.lane.b32.xlu0 %v432, 112
        %v798 = vpop.permute.xlu0 %797
        %799 = vrot.lane.b32.xlu0 %v432, 80
        %v800 = vpop.permute.xlu0 %799
        %v801 = vsel %vm440, %v798, 0
        %v803 = vsel %vm440, %v800, 0
        %805 = vmatpush.xpose.msra.mxu0 0.0
        %806 = vmatpush.xpose.msra.mxu0 0.0
        %807 = vmatpush.xpose.msra.mxu0 0.0
        %808 = vmatpush.xpose.msra.mxu0 0.0
        %809 = vmatpush.xpose.msra.mxu0 0.0
        %810 = vmatpush.xpose.msra.mxu0 0.0
        %811 = vmatpush.xpose.msra.mxu0 0.0
        %812 = vmatpush.xpose.msra.mxu0 0.0
        %813 = vmatpush.xpose.msra.mxu0 0.0
        %814 = vmatpush.xpose.msra.mxu0 0.0
        %815 = vmatpush.xpose.msra.mxu0 0.0
        %816 = vmatpush.xpose.msra.mxu0 0.0
        %817 = vmatpush.xpose.msra.mxu0 0.0
        %818 = vmatpush.xpose.msra.mxu0 0.0
        %819 = vmatpush.xpose.msra.mxu0 0.0
        %820 = vmatpush.xpose.msra.mxu0 %v803
        %821 = vmatmul.f32.gmra.mxu0 %v801
        %v822 = vpop.f32.mrf.mxu0
        %v823 = vadd.f32 %v768, %v822
        %824 = vdwg.mxu0
        %v825 = vadd.f32 %v795, %v434
        %v826 = vadd.f32 %v823, %v435
        %v827 = vsel %vm440, %v825, -inf
        %828 = vmax.xlane.f32.xlu0 %v827
        %v829 = vpop.xlane.xlu0 %828
        %v830 = vsel %vm440, %v826, -inf
        %831 = vmax.xlane.f32.xlu0 %v830
        %v832 = vpop.xlane.xlu0 %831
        %v833 = vsub.f32 %v825, %v829
        %v834 = vsub.f32 %v826, %v832
        %v835 = vmul.f32 %v833, 1.442695
        %v836 = vpow.pop %v835
        %v837 = vmul.f32 %v834, 1.442695
        %v838 = vpow.pop %v837
        %v839 = vsel %vm440, %v836, 0.0
        %840 = vadd.xlane.f32.xlu0 %v839
        %v841 = vpop.xlane.xlu0 %840
        %v842 = vsel %vm440, %v838, 0.0
        %843 = vadd.xlane.f32.xlu0 %v842
        %v844 = vpop.xlane.xlu0 %843
        %v845 = vrcp.pop %v841
        %v846 = vmul.f32 %v841, %v845
        %v847 = vsub.f32 1.0, %v846
        %v848 = vmul.f32 %v845, %v847
        %v849 = vadd.f32 %v845, %v848
        %vm850 = vweird.f32 %v841
        %vm851 = vweird.f32 %v845
        %vm852 = vmor %vm850, %vm851
        %v853 = vsel %vm852, %v845, %v849
        %v854 = vand.u32 2147483647, %v841
        %vm855 = vcmp.eq.f32.partialorder %v854, 8.507059e+37
        %v856 = vand.u32 %v841, 2147483648
        %v857 = vor.u32 1.1754944e-38, %v856
        %v858 = vsel %vm855, %v857, %v853
        %v859 = vrcp.pop %v844
        %v860 = vmul.f32 %v844, %v859
        %v861 = vsub.f32 1.0, %v860
        %v862 = vmul.f32 %v859, %v861
        %v863 = vadd.f32 %v859, %v862
        %vm864 = vweird.f32 %v844
        %vm865 = vweird.f32 %v859
        %vm866 = vmor %vm864, %vm865
        %v867 = vsel %vm866, %v859, %v863
        %v868 = vand.u32 2147483647, %v844
        %vm869 = vcmp.eq.f32.partialorder %v868, 8.507059e+37
        %v870 = vand.u32 %v844, 2147483648
        %v871 = vor.u32 1.1754944e-38, %v870
        %v872 = vsel %vm869, %v871, %v867
        %v873 = vmul.f32 %v836, %v858
        %v874 = vmul.f32 %v838, %v872
        %875 = vrot.lane.b32.xlu0 %v429, 48
        %v876 = vpop.permute.xlu0 %875
        %v879 = vsel %vm440, %v873, 0
        %881 = vmatpush.msra.mxu0 0.0
        %882 = vmatpush.msra.mxu0 0.0
        %883 = vmatpush.msra.mxu0 0.0
        %884 = vmatpush.msra.mxu0 0.0
        %885 = vmatpush.msra.mxu0 0.0
        %886 = vmatpush.msra.mxu0 0.0
        %887 = vmatpush.msra.mxu0 0.0
        %888 = vmatpush.msra.mxu0 0.0
        %889 = vmatpush.msra.mxu0 0.0
        %890 = vmatpush.msra.mxu0 0.0
        %891 = vmatpush.msra.mxu0 0.0
        %892 = vmatpush.msra.mxu0 0.0
        %893 = vmatpush.msra.mxu0 0.0
        %894 = vmatpush.msra.mxu0 0.0
        %895 = vmatpush.msra.mxu0 0.0
        %896 = vmatpush.msra.mxu0 %v876
        %897 = vmatmul.f32.gmra.mxu0 %v879
        %v898 = vpop.f32.mrf.mxu0
        %v899 = vadd.f32 0.0, %v898
        %900 = vdwg.mxu0
        %901 = vrot.lane.b32.xlu0 %v432, 48
        %v902 = vpop.permute.xlu0 %901
        %v905 = vsel %vm440, %v874, 0
        %907 = vmatpush.msra.mxu0 0.0
        %908 = vmatpush.msra.mxu0 0.0
        %909 = vmatpush.msra.mxu0 0.0
        %910 = vmatpush.msra.mxu0 0.0
        %911 = vmatpush.msra.mxu0 0.0
        %912 = vmatpush.msra.mxu0 0.0
        %913 = vmatpush.msra.mxu0 0.0
        %914 = vmatpush.msra.mxu0 0.0
        %915 = vmatpush.msra.mxu0 0.0
        %916 = vmatpush.msra.mxu0 0.0
        %917 = vmatpush.msra.mxu0 0.0
        %918 = vmatpush.msra.mxu0 0.0
        %919 = vmatpush.msra.mxu0 0.0
        %920 = vmatpush.msra.mxu0 0.0
        %921 = vmatpush.msra.mxu0 0.0
        %922 = vmatpush.msra.mxu0 %v902
        %923 = vmatmul.f32.gmra.mxu0 %v905
        %v924 = vpop.f32.mrf.mxu0
        %v925 = vadd.f32 0.0, %v924
        %926 = vdwg.mxu0
        %929 = vrot.lane.b32.xlu0 %v899, 16
        %v930 = vpop.permute.xlu0 %929
        %931 = vrot.lane.b32.xlu0 %v925, 16
        %v932 = vpop.permute.xlu0 %931
        %vm935 = vcmask 195712
        %936 = vst.msk [vmem:[#allocation2] sm:$0xff] %vm935, %v930
        %937 = vst.msk [vmem:[#allocation2 + $0x8] sm:$0xff] %vm935, %v932
        %s938 = scalar_lea.vmem [#allocation9], 24
        %v939 = vld [vmem:[%s938] sm:$0xff]
        %940 = vrot.lane.b32.xlu0 %v429, 104
        %v941 = vpop.permute.xlu0 %940
        %942 = vrot.lane.b32.xlu0 %v429, 72
        %v943 = vpop.permute.xlu0 %942
        %v944 = vsel %vm440, %v941, 0
        %v946 = vsel %vm440, %v943, 0
        %948 = vmatpush.xpose.msra.mxu0 0.0
        %949 = vmatpush.xpose.msra.mxu0 0.0
        %950 = vmatpush.xpose.msra.mxu0 0.0
        %951 = vmatpush.xpose.msra.mxu0 0.0
        %952 = vmatpush.xpose.msra.mxu0 0.0
        %953 = vmatpush.xpose.msra.mxu0 0.0
        %954 = vmatpush.xpose.msra.mxu0 0.0
        %955 = vmatpush.xpose.msra.mxu0 0.0
        %956 = vmatpush.xpose.msra.mxu0 0.0
        %957 = vmatpush.xpose.msra.mxu0 0.0
        %958 = vmatpush.xpose.msra.mxu0 0.0
        %959 = vmatpush.xpose.msra.mxu0 0.0
        %960 = vmatpush.xpose.msra.mxu0 0.0
        %961 = vmatpush.xpose.msra.mxu0 0.0
        %962 = vmatpush.xpose.msra.mxu0 0.0
        %963 = vmatpush.xpose.msra.mxu0 %v946
        %964 = vmatmul.f32.gmra.mxu0 %v944
        %v965 = vpop.f32.mrf.mxu0
        %v966 = vadd.f32 %v939, %v965
        %967 = vdwg.mxu0
        %968 = vrot.lane.b32.xlu0 %v432, 104
        %v969 = vpop.permute.xlu0 %968
        %970 = vrot.lane.b32.xlu0 %v432, 72
        %v971 = vpop.permute.xlu0 %970
        %v972 = vsel %vm440, %v969, 0
        %v974 = vsel %vm440, %v971, 0
        %976 = vmatpush.xpose.msra.mxu0 0.0
        %977 = vmatpush.xpose.msra.mxu0 0.0
        %978 = vmatpush.xpose.msra.mxu0 0.0
        %979 = vmatpush.xpose.msra.mxu0 0.0
        %980 = vmatpush.xpose.msra.mxu0 0.0
        %981 = vmatpush.xpose.msra.mxu0 0.0
        %982 = vmatpush.xpose.msra.mxu0 0.0
        %983 = vmatpush.xpose.msra.mxu0 0.0
        %984 = vmatpush.xpose.msra.mxu0 0.0
        %985 = vmatpush.xpose.msra.mxu0 0.0
        %986 = vmatpush.xpose.msra.mxu0 0.0
        %987 = vmatpush.xpose.msra.mxu0 0.0
        %988 = vmatpush.xpose.msra.mxu0 0.0
        %989 = vmatpush.xpose.msra.mxu0 0.0
        %990 = vmatpush.xpose.msra.mxu0 0.0
        %991 = vmatpush.xpose.msra.mxu0 %v974
        %992 = vmatmul.f32.gmra.mxu0 %v972
        %v993 = vpop.f32.mrf.mxu0
        %v994 = vadd.f32 %v939, %v993
        %995 = vdwg.mxu0
        %v996 = vadd.f32 %v966, %v434
        %v997 = vadd.f32 %v994, %v435
        %v998 = vsel %vm440, %v996, -inf
        %999 = vmax.xlane.f32.xlu0 %v998
        %v1000 = vpop.xlane.xlu0 %999
        %v1001 = vsel %vm440, %v997, -inf
        %1002 = vmax.xlane.f32.xlu0 %v1001
        %v1003 = vpop.xlane.xlu0 %1002
        %v1004 = vsub.f32 %v996, %v1000
        %v1005 = vsub.f32 %v997, %v1003
        %v1006 = vmul.f32 %v1004, 1.442695
        %v1007 = vpow.pop %v1006
        %v1008 = vmul.f32 %v1005, 1.442695
        %v1009 = vpow.pop %v1008
        %v1010 = vsel %vm440, %v1007, 0.0
        %1011 = vadd.xlane.f32.xlu0 %v1010
        %v1012 = vpop.xlane.xlu0 %1011
        %v1013 = vsel %vm440, %v1009, 0.0
        %1014 = vadd.xlane.f32.xlu0 %v1013
        %v1015 = vpop.xlane.xlu0 %1014
        %v1016 = vrcp.pop %v1012
        %v1017 = vmul.f32 %v1012, %v1016
        %v1018 = vsub.f32 1.0, %v1017
        %v1019 = vmul.f32 %v1016, %v1018
        %v1020 = vadd.f32 %v1016, %v1019
        %vm1021 = vweird.f32 %v1012
        %vm1022 = vweird.f32 %v1016
        %vm1023 = vmor %vm1021, %vm1022
        %v1024 = vsel %vm1023, %v1016, %v1020
        %v1025 = vand.u32 2147483647, %v1012
        %vm1026 = vcmp.eq.f32.partialorder %v1025, 8.507059e+37
        %v1027 = vand.u32 %v1012, 2147483648
        %v1028 = vor.u32 1.1754944e-38, %v1027
        %v1029 = vsel %vm1026, %v1028, %v1024
        %v1030 = vrcp.pop %v1015
        %v1031 = vmul.f32 %v1015, %v1030
        %v1032 = vsub.f32 1.0, %v1031
        %v1033 = vmul.f32 %v1030, %v1032
        %v1034 = vadd.f32 %v1030, %v1033
        %vm1035 = vweird.f32 %v1015
        %vm1036 = vweird.f32 %v1030
        %vm1037 = vmor %vm1035, %vm1036
        %v1038 = vsel %vm1037, %v1030, %v1034
        %v1039 = vand.u32 2147483647, %v1015
        %vm1040 = vcmp.eq.f32.partialorder %v1039, 8.507059e+37
        %v1041 = vand.u32 %v1015, 2147483648
        %v1042 = vor.u32 1.1754944e-38, %v1041
        %v1043 = vsel %vm1040, %v1042, %v1038
        %v1044 = vmul.f32 %v1007, %v1029
        %v1045 = vmul.f32 %v1009, %v1043
        %1046 = vrot.lane.b32.xlu0 %v429, 40
        %v1047 = vpop.permute.xlu0 %1046
        %v1050 = vsel %vm440, %v1044, 0
        %1052 = vmatpush.msra.mxu0 0.0
        %1053 = vmatpush.msra.mxu0 0.0
        %1054 = vmatpush.msra.mxu0 0.0
        %1055 = vmatpush.msra.mxu0 0.0
        %1056 = vmatpush.msra.mxu0 0.0
        %1057 = vmatpush.msra.mxu0 0.0
        %1058 = vmatpush.msra.mxu0 0.0
        %1059 = vmatpush.msra.mxu0 0.0
        %1060 = vmatpush.msra.mxu0 0.0
        %1061 = vmatpush.msra.mxu0 0.0
        %1062 = vmatpush.msra.mxu0 0.0
        %1063 = vmatpush.msra.mxu0 0.0
        %1064 = vmatpush.msra.mxu0 0.0
        %1065 = vmatpush.msra.mxu0 0.0
        %1066 = vmatpush.msra.mxu0 0.0
        %1067 = vmatpush.msra.mxu0 %v1047
        %1068 = vmatmul.f32.gmra.mxu0 %v1050
        %v1069 = vpop.f32.mrf.mxu0
        %v1070 = vadd.f32 0.0, %v1069
        %1071 = vdwg.mxu0
        %1072 = vrot.lane.b32.xlu0 %v432, 40
        %v1073 = vpop.permute.xlu0 %1072
        %v1076 = vsel %vm440, %v1045, 0
        %1078 = vmatpush.msra.mxu0 0.0
        %1079 = vmatpush.msra.mxu0 0.0
        %1080 = vmatpush.msra.mxu0 0.0
        %1081 = vmatpush.msra.mxu0 0.0
        %1082 = vmatpush.msra.mxu0 0.0
        %1083 = vmatpush.msra.mxu0 0.0
        %1084 = vmatpush.msra.mxu0 0.0
        %1085 = vmatpush.msra.mxu0 0.0
        %1086 = vmatpush.msra.mxu0 0.0
        %1087 = vmatpush.msra.mxu0 0.0
        %1088 = vmatpush.msra.mxu0 0.0
        %1089 = vmatpush.msra.mxu0 0.0
        %1090 = vmatpush.msra.mxu0 0.0
        %1091 = vmatpush.msra.mxu0 0.0
        %1092 = vmatpush.msra.mxu0 0.0
        %1093 = vmatpush.msra.mxu0 %v1073
        %1094 = vmatmul.f32.gmra.mxu0 %v1076
        %v1095 = vpop.f32.mrf.mxu0
        %v1096 = vadd.f32 0.0, %v1095
        %1097 = vdwg.mxu0
        %1100 = vrot.lane.b32.xlu0 %v1070, 24
        %v1101 = vpop.permute.xlu0 %1100
        %1102 = vrot.lane.b32.xlu0 %v1096, 24
        %v1103 = vpop.permute.xlu0 %1102
        %vm1106 = vcmask 261312
        %1107 = vst.msk [vmem:[#allocation2] sm:$0xff] %vm1106, %v1101
        %1108 = vst.msk [vmem:[#allocation2 + $0x8] sm:$0xff] %vm1106, %v1103
        %v1109 = vld [vmem:[#allocation2] sm:$0xff]
        %v1110 = vld [vmem:[#allocation2 + $0x8] sm:$0xff]
        %v1111 = vld [vmem:[#allocation8] sm:$0xff]
        %v1112 = vld [vmem:[#allocation8 + $0x8] sm:$0xff]
        %v1113 = vld [vmem:[#allocation8 + $0x10] sm:$0xff]
        %v1114 = vld [vmem:[#allocation8 + $0x18] sm:$0xff]
        %v1115 = vld [vmem:[%s4] sm:$0x1]
        %v1117 = vperm.slane %v1115, 0
        %v1120 = vsel %vm404, %v1109, 0
        %v1123 = vsel %vm404, %v1110, 0
        %1125 = vmatpush.msra.mxu0 0.0
        %1126 = vmatpush.msra.mxu0 0.0
        %1127 = vmatpush.msra.mxu0 0.0
        %1128 = vmatpush.msra.mxu0 0.0
        %1129 = vmatpush.msra.mxu0 0.0
        %1130 = vmatpush.msra.mxu0 0.0
        %1131 = vmatpush.msra.mxu0 0.0
        %1132 = vmatpush.msra.mxu0 0.0
        %1133 = vmatpush.msra.mxu0 0.0
        %1134 = vmatpush.msra.mxu0 0.0
        %1135 = vmatpush.msra.mxu0 0.0
        %1136 = vmatpush.msra.mxu0 0.0
        %1137 = vmatpush.msra.mxu0 %v1114
        %1138 = vmatpush.msra.mxu0 %v1113
        %1139 = vmatpush.msra.mxu0 %v1112
        %1140 = vmatpush.msra.mxu0 %v1111
        %1141 = vmatmul.f32.gmra.mxu0 %v1120
        %v1142 = vpop.f32.mrf.mxu0
        %v1143 = vadd.f32 %v1117, %v1142
        %1144 = vmatmul.f32.gmra.mxu0 %v1123
        %v1145 = vpop.f32.mrf.mxu0
        %v1146 = vadd.f32 %v1117, %v1145
        %1147 = vdwg.mxu0
        %1148 = vst.msk [vmem:[%s390] sm:$0xff] %vm404, %v1143
        %1149 = vst.msk [vmem:[%s390 + $0x8] sm:$0xff] %vm404, %v1146
        %s1150 = sand.u32 %s207, 1
        %s1151 = scalar_lea.sflag [#allocation5], %s1150
        %s1152 = sand.u32 %s207, 1
        %s1153 = smul.addr %s1152, 16
        %s1154 = scalar_lea.vmem [#allocation12], %s1153
        // Predicated region
        $region69: #{tpu_custom_call.1} parent=47 // pred_check
          %p1155 = pneg %p217
        $region70: #{tpu_custom_call.1} parent=47 // pred_check_branch
          %1157 = sbr.rel (%p1155) target = $region72
        $region71: #{tpu_custom_call.1} parent=47 // pred_region
          %s1158 = smul.u32 2, %s31
          %1160 = vsyncadd %s1151, 0
          %s1161 = smul.addr %s30, 2
          %s1162 = sadd.s32 %s1158, %s1161
          %s1163 = smul.addr %s1162, 8
          %s1164 = scalar_lea.hbm %s7, %s1163
          %s1165 = sshll.u32 %s1154, 4
          %s1166 = int_to_ptr.vmem [resolvable:$true] %s1165
          %s1167 = sshll.u32 %s1164, 4
          %s1168 = int_to_ptr.hbm [resolvable:$true] %s1167
          %1173 = dma.vmem_to_hbm [thread:$0]  %s1166, 256, %s1168, %s1151, 128, 128, 8
        $region72: #{tpu_custom_call.1} parent=47 // pred_fallthru
          _
      $region48: #{tpu_custom_call.1} parent=5 // pred_fallthru
        _
      %p1174 = scmp.le.s32.totalorder 2, %s21
      // Predicated region
      $region73: #{tpu_custom_call.1} parent=5 // pred_check
        %p1175 = pneg %p1174
      $region74: #{tpu_custom_call.1} parent=5 // pred_check_branch
        %1177 = sbr.rel (%p1175) target = $region76
      $region75: #{tpu_custom_call.1} parent=5 // pred_region
        %s1178 = ssub.s32 %s21, 2
        // Predicated region
        $region77: #{tpu_custom_call.1} parent=75 // pred_check
          %p1179 = pneg %p223
        $region78: #{tpu_custom_call.1} parent=75 // pred_check_branch
          %1181 = sbr.rel (%p1179) target = $region80
        $region79: #{tpu_custom_call.1} parent=75 // pred_region
          %s1182 = sand.u32 %s208, 1
          %s1183 = scalar_lea.sflag [#allocation5], %s1182
          %s1184 = sand.u32 %s208, 1
          %s1185 = smul.addr %s1184, 16
          %s1186 = scalar_lea.vmem [#allocation12], %s1185
          %1188 = dma.done %s1183, 256
        $region80: #{tpu_custom_call.1} parent=75 // pred_fallthru
          _
      $region76: #{tpu_custom_call.1} parent=5 // pred_fallthru
        _
    $region6: #{tpu_custom_call.1} parent=1 // loop_footer
      %s25 = sadd.s32 1, %s21
    $region7: #{tpu_custom_call.1} parent=1 // loop_footer_branch
      %20 = sbr.rel target = $region3
    $region8: #{tpu_custom_call.1} parent=1 // loop_exit
      _
    %1189 = vsyncpa [#allocation4], 1
    %s1190 = scalar_lea.sflag [#allocation4], 1
    %1191 = vsyncpa %s1190, 1
    %1192 = vsyncpa [#allocation7], 1
    %1193 = vsyncpa [#allocation10], 1
    %1194 = vsyncpa [#allocation5], 1
    %s1195 = scalar_lea.sflag [#allocation5], 1
    %1196 = vsyncpa %s1195, 1

</llo_original>
